<compile_context>
chip_gen: v5e
topology: v5e:2x2
jax: 0.10.0
libtpu: 0.0.40
codegen_flags: <defaults>
</compile_context>

<pallas_src>
import jax
import jax.numpy as jnp
from jax.experimental import pallas as pl
from jax.experimental.pallas import tpu as pltpu

BN_EPS = 1e-5
P = 128              # lane-dense padded feature width
NUM_W = 11           # linear1..3, fc1, fc21, fc22, fc3, fc4, linear4..6
NUM_BN = 9           # lin_bn1..3, bn1, fc_bn3, fc_bn4, lin_bn4..6
VEC_BLOCK = NUM_W    # column-block index holding the packed vector params

# Vector-row layout inside block VEC_BLOCK:
#   row 0 : fc21 bias      row 1 : fc22 bias
#   rows 2..10  : BN gammas (lin_bn1..3, bn1, fc_bn3, fc_bn4, lin_bn4..6)
#   rows 11..19 : BN betas  (same order)
ROW_B21, ROW_B22, ROW_G0, ROW_BETA0 = 0, 1, 2, 2 + NUM_BN

# bf16 MXU inputs for v6e/v7x (halves weight DMA + MXU passes); accumulation
# stays f32.  Use jnp.float32 on v5e if bit-exact parity vs f32 is required.
MATMUL_DTYPE = jnp.bfloat16


def _bn_train(y, gamma, beta, n):
    """Training-mode BatchNorm1d with one-pass statistics (all f32).

    mean = sum(y)/n ; var = sum(y*y)/n - mean^2 (biased) ; out = y*scale + shift
    with scale = gamma*rsqrt(var+eps), shift = beta - mean*scale.
    """
    inv_n = 1.0 / n
    mean = jnp.sum(y, axis=0, keepdims=True) * inv_n
    msq = jnp.sum(y * y, axis=0, keepdims=True) * inv_n
    var = jnp.maximum(msq - mean * mean, 0.0)       # guard f32 cancellation
    inv = jax.lax.rsqrt(var + BN_EPS)               # EUP
    scale = gamma * inv
    shift = beta - mean * scale
    return y * scale + shift


def vae_kernel(xe_ref, w_ref, out_ref):
    n = xe_ref.shape[0]
    x = xe_ref[:, :P]            # f32, zero-padded past D_in
    eps = xe_ref[:, P:2 * P]     # f32, zero-padded past latent

    # All vector params in one lane-dense read (rows 0..31 cover the 20 used),
    # cast once to f32 for BN / bias math.
    vecs = w_ref[:32, VEC_BLOCK * P:(VEC_BLOCK + 1) * P].astype(jnp.float32)

    def w(i):                    # (P, P) weight block i, stored (in, out), bf16
        return w_ref[:, i * P:(i + 1) * P]

    def vec(r):                  # (1, P) packed vector row r, f32
        return vecs[r:r + 1, :]

    def lin(h, wi):              # bias-free linear (bias cancelled by train BN)
        return jnp.dot(h.astype(MATMUL_DTYPE), w(wi),
                       preferred_element_type=jnp.float32)

    def lin_bn_relu(h, wi, bni):
        y = lin(h, wi)
        return jnp.maximum(
            _bn_train(y, vec(ROW_G0 + bni), vec(ROW_BETA0 + bni), n), 0.0)

    # ---------------- encode ----------------
    h1 = lin_bn_relu(x, 0, 0)      # linear1 / lin_bn1
    h2 = lin_bn_relu(h1, 1, 1)     # linear2 / lin_bn2
    h3 = lin_bn_relu(h2, 2, 2)     # linear3 / lin_bn3
    f1 = lin_bn_relu(h3, 3, 3)     # fc1     / bn1

    # Fused mu/logvar projection: fc21 (block 4) and fc22 (block 5) are
    # adjacent column blocks -> one (N,128)x(128,256) matmul, lane-aligned split.
    r = jnp.dot(f1.astype(MATMUL_DTYPE), w_ref[:, 4 * P:6 * P],
                preferred_element_type=jnp.float32)
    mu = r[:, :P] + vec(ROW_B21)
    logvar = r[:, P:] + vec(ROW_B22)

    # ------------- reparameterize (training mode) -------------
    z = eps * jnp.exp(0.5 * logvar) + mu

    # ---------------- decode ----------------
    d1 = lin_bn_relu(z, 6, 4)      # fc3     / fc_bn3
    d2 = lin_bn_relu(d1, 7, 5)     # fc4     / fc_bn4
    d3 = lin_bn_relu(d2, 8, 6)     # linear4 / lin_bn4
    d4 = lin_bn_relu(d3, 9, 7)     # linear5 / lin_bn5
    recon = _bn_train(lin(d4, 10), vec(ROW_G0 + 8), vec(ROW_BETA0 + 8), n)

    # Single lane-dense output slab: [recon | mu | logvar]
    out_ref[:, :P] = recon
    out_ref[:, P:2 * P] = mu
    out_ref[:, 2 * P:3 * P] = logvar


def make_params(key, d_in, h=50, h2=12, latent=3):
    """Deterministic parameter init matching the PyTorch module's shapes."""
    lin_dims = [(d_in, h), (h, h2), (h2, h2), (h2, latent), (latent, latent),
                (latent, latent), (latent, latent), (latent, h2), (h2, h2),
                (h2, h), (h, d_in)]
    bn_dims = [h, h2, h2, latent, latent, h2, h2, h, d_in]

    weights, biases = [], []
    for fin, fout in lin_dims:
        key, kw, kb = jax.random.split(key, 3)
        weights.append(jax.random.normal(kw, (fin, fout), jnp.float32) * 0.2)  # W^T
        biases.append(jax.random.normal(kb, (fout,), jnp.float32) * 0.05)
    gammas = [jnp.ones((f,), jnp.float32) for f in bn_dims]    # PyTorch default
    betas = [jnp.zeros((f,), jnp.float32) for f in bn_dims]
    return weights, biases, gammas, betas


def pack_params(weights, biases, gammas, betas):
    """Pack everything into ONE lane-dense param slab (P, 12*P) in MATMUL_DTYPE.

    Blocks 0..10: the 11 linear weights (zero-padded (in,out) blocks).
    Block  11   : vector rows — fc21/fc22 biases + 9 gammas + 9 betas.
    The other 9 linear biases are dropped: a per-feature constant is exactly
    cancelled by the training-mode BatchNorm that follows each of those layers.
    """
    slab = jnp.zeros((P, (NUM_W + 1) * P), jnp.float32)
    for i, w in enumerate(weights):
        fin, fout = w.shape
        slab = slab.at[:fin, i * P:i * P + fout].set(w)

    base = VEC_BLOCK * P
    b21, b22 = biases[4], biases[5]                       # fc21 / fc22 only
    slab = slab.at[ROW_B21, base:base + b21.shape[0]].set(b21)
    slab = slab.at[ROW_B22, base:base + b22.shape[0]].set(b22)
    for j, g in enumerate(gammas):                        # pad gamma = 0
        slab = slab.at[ROW_G0 + j, base:base + g.shape[0]].set(g)
    for j, be in enumerate(betas):                        # pad beta = 0
        slab = slab.at[ROW_BETA0 + j, base:base + be.shape[0]].set(be)
    return slab.astype(MATMUL_DTYPE)


def vae_forward(x, eps, param_slab, d_in, latent):
    n = x.shape[0]
    # One input slab: [x | eps], zero-padded lanes stay exactly 0 end-to-end.
    xe = (jnp.zeros((n, 2 * P), jnp.float32)
          .at[:, :d_in].set(x)
          .at[:, P:P + latent].set(eps))

    vmem = pl.BlockSpec(memory_space=pltpu.MemorySpace.VMEM)
    itemsize = jnp.dtype(param_slab.dtype).itemsize
    cost = pl.CostEstimate(
        flops=2 * n * P * P * (NUM_W + 1),        # 11 linears; fused mu/logvar = 2 blocks
        transcendentals=NUM_BN * P + n * P,       # 9 rsqrt rows + exp for std
        bytes_accessed=int(xe.size * 4 + param_slab.size * itemsize + n * 3 * P * 4),
    )

    out = pl.pallas_call(
        vae_kernel,
        out_shape=jax.ShapeDtypeStruct((n, 3 * P), jnp.float32),
        in_specs=[vmem, vmem],
        out_specs=vmem,
        cost_estimate=cost,
    )(xe, param_slab)

    # Slice padded lanes back off in the wrapper (cheap XLA slices).
    recon = out[:, :d_in]
    mu = out[:, P:P + latent]
    logvar = out[:, 2 * P:2 * P + latent]
    return recon, mu, logvar


if __name__ == "__main__":
    N, D_IN, H, H2, LATENT = 8, 16, 50, 12, 3

    key = jax.random.PRNGKey(0)
    key, kx, keps, kp = jax.random.split(key, 4)

    x = jax.random.normal(kx, (N, D_IN), jnp.float32)
    eps = jax.random.normal(keps, (N, LATENT), jnp.float32)   # reparam noise
    weights, biases, gammas, betas = make_params(kp, D_IN, H, H2, LATENT)
    param_slab = pack_params(weights, biases, gammas, betas)

    recon, mu, logvar = vae_forward(x, eps, param_slab, D_IN, LATENT)
    jax.block_until_ready((recon, mu, logvar))

    assert recon.shape == (N, D_IN)
    assert mu.shape == (N, LATENT) and logvar.shape == (N, LATENT)
    assert bool(jnp.all(jnp.isfinite(recon)))
    print("KERNEL_OK")
</pallas_src>

<mosaic_0001>
module attributes {stable_mosaic.version = 11 : i64} {
  func.func @vae_kernel(%arg0: memref<8x256xf32, #tpu.memory_space<vmem>>, %arg1: memref<128x1536xbf16, #tpu.memory_space<vmem>>, %arg2: memref<8x384xf32, #tpu.memory_space<vmem>>) attributes {dimension_semantics = [], scalar_prefetch = 0 : i64, scratch_operands = 0 : i64, tpu.core_type = #tpu.core_type<tc>} {
    %c0 = arith.constant 0 : index
    %c0_0 = arith.constant 0 : index
    %0 = vector.load %arg0[%c0, %c0_0] : memref<8x256xf32, #tpu.memory_space<vmem>>, vector<8x128xf32>
    %c0_1 = arith.constant 0 : index
    %c128 = arith.constant 128 : index
    %1 = vector.load %arg0[%c0_1, %c128] : memref<8x256xf32, #tpu.memory_space<vmem>>, vector<8x128xf32>
    %c0_2 = arith.constant 0 : index
    %c1408 = arith.constant 1408 : index
    %2 = vector.load %arg1[%c0_2, %c1408] : memref<128x1536xbf16, #tpu.memory_space<vmem>>, vector<32x128xbf16>
    %3 = arith.extf %2 : vector<32x128xbf16> to vector<32x128xf32>
    %4 = arith.truncf %0 : vector<8x128xf32> to vector<8x128xbf16>
    %c0_3 = arith.constant 0 : index
    %c0_4 = arith.constant 0 : index
    %5 = vector.load %arg1[%c0_3, %c0_4] : memref<128x1536xbf16, #tpu.memory_space<vmem>>, vector<128x128xbf16>
    %cst = arith.constant dense<0.000000e+00> : vector<8x128xf32>
    %6 = tpu.matmul %4, %5, %cst {dimension_numbers = #tpu.dot_dimension_numbers<[1], [0], [0], [1], [0, 0, 1, 1], [], []>} : vector<8x128xbf16>, vector<128x128xbf16>, vector<8x128xf32> -> vector<8x128xf32>
    %7 = vector.extract_strided_slice %3 {offsets = [2, 0], sizes = [1, 128], strides = [1, 1]} : vector<32x128xf32> to vector<1x128xf32>
    %8 = vector.extract_strided_slice %3 {offsets = [11, 0], sizes = [1, 128], strides = [1, 1]} : vector<32x128xf32> to vector<1x128xf32>
    %cst_5 = arith.constant dense<0.000000e+00> : vector<128xf32>
    %9 = vector.multi_reduction <add>, %6, %cst_5 [0] : vector<8x128xf32> to vector<128xf32>
    %10 = vector.shape_cast %9 : vector<128xf32> to vector<1x128xf32>
    %cst_6 = arith.constant 1.250000e-01 : f32
    %11 = vector.broadcast %cst_6 : f32 to vector<1x128xf32>
    %12 = arith.mulf %10, %11 : vector<1x128xf32>
    %13 = arith.mulf %6, %6 : vector<8x128xf32>
    %cst_7 = arith.constant dense<0.000000e+00> : vector<128xf32>
    %14 = vector.multi_reduction <add>, %13, %cst_7 [0] : vector<8x128xf32> to vector<128xf32>
    %15 = vector.shape_cast %14 : vector<128xf32> to vector<1x128xf32>
    %cst_8 = arith.constant 1.250000e-01 : f32
    %16 = vector.broadcast %cst_8 : f32 to vector<1x128xf32>
    %17 = arith.mulf %15, %16 : vector<1x128xf32>
    %18 = arith.mulf %12, %12 : vector<1x128xf32>
    %19 = arith.subf %17, %18 : vector<1x128xf32>
    %cst_9 = arith.constant 0.000000e+00 : f32
    %20 = vector.broadcast %cst_9 : f32 to vector<1x128xf32>
    %21 = arith.maximumf %19, %20 : vector<1x128xf32>
    %cst_10 = arith.constant 9.99999974E-6 : f32
    %22 = vector.broadcast %cst_10 : f32 to vector<1x128xf32>
    %23 = arith.addf %21, %22 : vector<1x128xf32>
    %24 = math.rsqrt %23 : vector<1x128xf32>
    %25 = arith.mulf %7, %24 : vector<1x128xf32>
    %26 = arith.mulf %12, %25 : vector<1x128xf32>
    %27 = arith.subf %8, %26 : vector<1x128xf32>
    %28 = vector.broadcast %25 : vector<1x128xf32> to vector<8x128xf32>
    %29 = arith.mulf %6, %28 : vector<8x128xf32>
    %30 = vector.broadcast %27 : vector<1x128xf32> to vector<8x128xf32>
    %31 = arith.addf %29, %30 : vector<8x128xf32>
    %cst_11 = arith.constant 0.000000e+00 : f32
    %32 = vector.broadcast %cst_11 : f32 to vector<8x128xf32>
    %33 = arith.maximumf %31, %32 : vector<8x128xf32>
    %34 = arith.truncf %33 : vector<8x128xf32> to vector<8x128xbf16>
    %c0_12 = arith.constant 0 : index
    %c128_13 = arith.constant 128 : index
    %35 = vector.load %arg1[%c0_12, %c128_13] : memref<128x1536xbf16, #tpu.memory_space<vmem>>, vector<128x128xbf16>
    %cst_14 = arith.constant dense<0.000000e+00> : vector<8x128xf32>
    %36 = tpu.matmul %34, %35, %cst_14 {dimension_numbers = #tpu.dot_dimension_numbers<[1], [0], [0], [1], [0, 0, 1, 1], [], []>} : vector<8x128xbf16>, vector<128x128xbf16>, vector<8x128xf32> -> vector<8x128xf32>
    %37 = vector.extract_strided_slice %3 {offsets = [3, 0], sizes = [1, 128], strides = [1, 1]} : vector<32x128xf32> to vector<1x128xf32>
    %38 = vector.extract_strided_slice %3 {offsets = [12, 0], sizes = [1, 128], strides = [1, 1]} : vector<32x128xf32> to vector<1x128xf32>
    %cst_15 = arith.constant dense<0.000000e+00> : vector<128xf32>
    %39 = vector.multi_reduction <add>, %36, %cst_15 [0] : vector<8x128xf32> to vector<128xf32>
    %40 = vector.shape_cast %39 : vector<128xf32> to vector<1x128xf32>
    %cst_16 = arith.constant 1.250000e-01 : f32
    %41 = vector.broadcast %cst_16 : f32 to vector<1x128xf32>
    %42 = arith.mulf %40, %41 : vector<1x128xf32>
    %43 = arith.mulf %36, %36 : vector<8x128xf32>
    %cst_17 = arith.constant dense<0.000000e+00> : vector<128xf32>
    %44 = vector.multi_reduction <add>, %43, %cst_17 [0] : vector<8x128xf32> to vector<128xf32>
    %45 = vector.shape_cast %44 : vector<128xf32> to vector<1x128xf32>
    %cst_18 = arith.constant 1.250000e-01 : f32
    %46 = vector.broadcast %cst_18 : f32 to vector<1x128xf32>
    %47 = arith.mulf %45, %46 : vector<1x128xf32>
    %48 = arith.mulf %42, %42 : vector<1x128xf32>
    %49 = arith.subf %47, %48 : vector<1x128xf32>
    %cst_19 = arith.constant 0.000000e+00 : f32
    %50 = vector.broadcast %cst_19 : f32 to vector<1x128xf32>
    %51 = arith.maximumf %49, %50 : vector<1x128xf32>
    %cst_20 = arith.constant 9.99999974E-6 : f32
    %52 = vector.broadcast %cst_20 : f32 to vector<1x128xf32>
    %53 = arith.addf %51, %52 : vector<1x128xf32>
    %54 = math.rsqrt %53 : vector<1x128xf32>
    %55 = arith.mulf %37, %54 : vector<1x128xf32>
    %56 = arith.mulf %42, %55 : vector<1x128xf32>
    %57 = arith.subf %38, %56 : vector<1x128xf32>
    %58 = vector.broadcast %55 : vector<1x128xf32> to vector<8x128xf32>
    %59 = arith.mulf %36, %58 : vector<8x128xf32>
    %60 = vector.broadcast %57 : vector<1x128xf32> to vector<8x128xf32>
    %61 = arith.addf %59, %60 : vector<8x128xf32>
    %cst_21 = arith.constant 0.000000e+00 : f32
    %62 = vector.broadcast %cst_21 : f32 to vector<8x128xf32>
    %63 = arith.maximumf %61, %62 : vector<8x128xf32>
    %64 = arith.truncf %63 : vector<8x128xf32> to vector<8x128xbf16>
    %c0_22 = arith.constant 0 : index
    %c256 = arith.constant 256 : index
    %65 = vector.load %arg1[%c0_22, %c256] : memref<128x1536xbf16, #tpu.memory_space<vmem>>, vector<128x128xbf16>
    %cst_23 = arith.constant dense<0.000000e+00> : vector<8x128xf32>
    %66 = tpu.matmul %64, %65, %cst_23 {dimension_numbers = #tpu.dot_dimension_numbers<[1], [0], [0], [1], [0, 0, 1, 1], [], []>} : vector<8x128xbf16>, vector<128x128xbf16>, vector<8x128xf32> -> vector<8x128xf32>
    %67 = vector.extract_strided_slice %3 {offsets = [4, 0], sizes = [1, 128], strides = [1, 1]} : vector<32x128xf32> to vector<1x128xf32>
    %68 = vector.extract_strided_slice %3 {offsets = [13, 0], sizes = [1, 128], strides = [1, 1]} : vector<32x128xf32> to vector<1x128xf32>
    %cst_24 = arith.constant dense<0.000000e+00> : vector<128xf32>
    %69 = vector.multi_reduction <add>, %66, %cst_24 [0] : vector<8x128xf32> to vector<128xf32>
    %70 = vector.shape_cast %69 : vector<128xf32> to vector<1x128xf32>
    %cst_25 = arith.constant 1.250000e-01 : f32
    %71 = vector.broadcast %cst_25 : f32 to vector<1x128xf32>
    %72 = arith.mulf %70, %71 : vector<1x128xf32>
    %73 = arith.mulf %66, %66 : vector<8x128xf32>
    %cst_26 = arith.constant dense<0.000000e+00> : vector<128xf32>
    %74 = vector.multi_reduction <add>, %73, %cst_26 [0] : vector<8x128xf32> to vector<128xf32>
    %75 = vector.shape_cast %74 : vector<128xf32> to vector<1x128xf32>
    %cst_27 = arith.constant 1.250000e-01 : f32
    %76 = vector.broadcast %cst_27 : f32 to vector<1x128xf32>
    %77 = arith.mulf %75, %76 : vector<1x128xf32>
    %78 = arith.mulf %72, %72 : vector<1x128xf32>
    %79 = arith.subf %77, %78 : vector<1x128xf32>
    %cst_28 = arith.constant 0.000000e+00 : f32
    %80 = vector.broadcast %cst_28 : f32 to vector<1x128xf32>
    %81 = arith.maximumf %79, %80 : vector<1x128xf32>
    %cst_29 = arith.constant 9.99999974E-6 : f32
    %82 = vector.broadcast %cst_29 : f32 to vector<1x128xf32>
    %83 = arith.addf %81, %82 : vector<1x128xf32>
    %84 = math.rsqrt %83 : vector<1x128xf32>
    %85 = arith.mulf %67, %84 : vector<1x128xf32>
    %86 = arith.mulf %72, %85 : vector<1x128xf32>
    %87 = arith.subf %68, %86 : vector<1x128xf32>
    %88 = vector.broadcast %85 : vector<1x128xf32> to vector<8x128xf32>
    %89 = arith.mulf %66, %88 : vector<8x128xf32>
    %90 = vector.broadcast %87 : vector<1x128xf32> to vector<8x128xf32>
    %91 = arith.addf %89, %90 : vector<8x128xf32>
    %cst_30 = arith.constant 0.000000e+00 : f32
    %92 = vector.broadcast %cst_30 : f32 to vector<8x128xf32>
    %93 = arith.maximumf %91, %92 : vector<8x128xf32>
    %94 = arith.truncf %93 : vector<8x128xf32> to vector<8x128xbf16>
    %c0_31 = arith.constant 0 : index
    %c384 = arith.constant 384 : index
    %95 = vector.load %arg1[%c0_31, %c384] : memref<128x1536xbf16, #tpu.memory_space<vmem>>, vector<128x128xbf16>
    %cst_32 = arith.constant dense<0.000000e+00> : vector<8x128xf32>
    %96 = tpu.matmul %94, %95, %cst_32 {dimension_numbers = #tpu.dot_dimension_numbers<[1], [0], [0], [1], [0, 0, 1, 1], [], []>} : vector<8x128xbf16>, vector<128x128xbf16>, vector<8x128xf32> -> vector<8x128xf32>
    %97 = vector.extract_strided_slice %3 {offsets = [5, 0], sizes = [1, 128], strides = [1, 1]} : vector<32x128xf32> to vector<1x128xf32>
    %98 = vector.extract_strided_slice %3 {offsets = [14, 0], sizes = [1, 128], strides = [1, 1]} : vector<32x128xf32> to vector<1x128xf32>
    %cst_33 = arith.constant dense<0.000000e+00> : vector<128xf32>
    %99 = vector.multi_reduction <add>, %96, %cst_33 [0] : vector<8x128xf32> to vector<128xf32>
    %100 = vector.shape_cast %99 : vector<128xf32> to vector<1x128xf32>
    %cst_34 = arith.constant 1.250000e-01 : f32
    %101 = vector.broadcast %cst_34 : f32 to vector<1x128xf32>
    %102 = arith.mulf %100, %101 : vector<1x128xf32>
    %103 = arith.mulf %96, %96 : vector<8x128xf32>
    %cst_35 = arith.constant dense<0.000000e+00> : vector<128xf32>
    %104 = vector.multi_reduction <add>, %103, %cst_35 [0] : vector<8x128xf32> to vector<128xf32>
    %105 = vector.shape_cast %104 : vector<128xf32> to vector<1x128xf32>
    %cst_36 = arith.constant 1.250000e-01 : f32
    %106 = vector.broadcast %cst_36 : f32 to vector<1x128xf32>
    %107 = arith.mulf %105, %106 : vector<1x128xf32>
    %108 = arith.mulf %102, %102 : vector<1x128xf32>
    %109 = arith.subf %107, %108 : vector<1x128xf32>
    %cst_37 = arith.constant 0.000000e+00 : f32
    %110 = vector.broadcast %cst_37 : f32 to vector<1x128xf32>
    %111 = arith.maximumf %109, %110 : vector<1x128xf32>
    %cst_38 = arith.constant 9.99999974E-6 : f32
    %112 = vector.broadcast %cst_38 : f32 to vector<1x128xf32>
    %113 = arith.addf %111, %112 : vector<1x128xf32>
    %114 = math.rsqrt %113 : vector<1x128xf32>
    %115 = arith.mulf %97, %114 : vector<1x128xf32>
    %116 = arith.mulf %102, %115 : vector<1x128xf32>
    %117 = arith.subf %98, %116 : vector<1x128xf32>
    %118 = vector.broadcast %115 : vector<1x128xf32> to vector<8x128xf32>
    %119 = arith.mulf %96, %118 : vector<8x128xf32>
    %120 = vector.broadcast %117 : vector<1x128xf32> to vector<8x128xf32>
    %121 = arith.addf %119, %120 : vector<8x128xf32>
    %cst_39 = arith.constant 0.000000e+00 : f32
    %122 = vector.broadcast %cst_39 : f32 to vector<8x128xf32>
    %123 = arith.maximumf %121, %122 : vector<8x128xf32>
    %124 = arith.truncf %123 : vector<8x128xf32> to vector<8x128xbf16>
    %c0_40 = arith.constant 0 : index
    %c512 = arith.constant 512 : index
    %125 = vector.load %arg1[%c0_40, %c512] : memref<128x1536xbf16, #tpu.memory_space<vmem>>, vector<128x256xbf16>
    %cst_41 = arith.constant dense<0.000000e+00> : vector<8x256xf32>
    %126 = tpu.matmul %124, %125, %cst_41 {dimension_numbers = #tpu.dot_dimension_numbers<[1], [0], [0], [1], [0, 0, 1, 1], [], []>} : vector<8x128xbf16>, vector<128x256xbf16>, vector<8x256xf32> -> vector<8x256xf32>
    %127 = vector.extract_strided_slice %126 {offsets = [0, 0], sizes = [8, 128], strides = [1, 1]} : vector<8x256xf32> to vector<8x128xf32>
    %128 = vector.extract_strided_slice %3 {offsets = [0, 0], sizes = [1, 128], strides = [1, 1]} : vector<32x128xf32> to vector<1x128xf32>
    %129 = vector.broadcast %128 : vector<1x128xf32> to vector<8x128xf32>
    %130 = arith.addf %127, %129 : vector<8x128xf32>
    %131 = vector.extract_strided_slice %126 {offsets = [0, 128], sizes = [8, 128], strides = [1, 1]} : vector<8x256xf32> to vector<8x128xf32>
    %132 = vector.extract_strided_slice %3 {offsets = [1, 0], sizes = [1, 128], strides = [1, 1]} : vector<32x128xf32> to vector<1x128xf32>
    %133 = vector.broadcast %132 : vector<1x128xf32> to vector<8x128xf32>
    %134 = arith.addf %131, %133 : vector<8x128xf32>
    %cst_42 = arith.constant 5.000000e-01 : f32
    %135 = vector.broadcast %cst_42 : f32 to vector<8x128xf32>
    %136 = arith.mulf %135, %134 : vector<8x128xf32>
    %137 = math.exp %136 : vector<8x128xf32>
    %138 = arith.mulf %1, %137 : vector<8x128xf32>
    %139 = arith.addf %138, %130 : vector<8x128xf32>
    %140 = arith.truncf %139 : vector<8x128xf32> to vector<8x128xbf16>
    %c0_43 = arith.constant 0 : index
    %c768 = arith.constant 768 : index
    %141 = vector.load %arg1[%c0_43, %c768] : memref<128x1536xbf16, #tpu.memory_space<vmem>>, vector<128x128xbf16>
    %cst_44 = arith.constant dense<0.000000e+00> : vector<8x128xf32>
    %142 = tpu.matmul %140, %141, %cst_44 {dimension_numbers = #tpu.dot_dimension_numbers<[1], [0], [0], [1], [0, 0, 1, 1], [], []>} : vector<8x128xbf16>, vector<128x128xbf16>, vector<8x128xf32> -> vector<8x128xf32>
    %143 = vector.extract_strided_slice %3 {offsets = [6, 0], sizes = [1, 128], strides = [1, 1]} : vector<32x128xf32> to vector<1x128xf32>
    %144 = vector.extract_strided_slice %3 {offsets = [15, 0], sizes = [1, 128], strides = [1, 1]} : vector<32x128xf32> to vector<1x128xf32>
    %cst_45 = arith.constant dense<0.000000e+00> : vector<128xf32>
    %145 = vector.multi_reduction <add>, %142, %cst_45 [0] : vector<8x128xf32> to vector<128xf32>
    %146 = vector.shape_cast %145 : vector<128xf32> to vector<1x128xf32>
    %cst_46 = arith.constant 1.250000e-01 : f32
    %147 = vector.broadcast %cst_46 : f32 to vector<1x128xf32>
    %148 = arith.mulf %146, %147 : vector<1x128xf32>
    %149 = arith.mulf %142, %142 : vector<8x128xf32>
    %cst_47 = arith.constant dense<0.000000e+00> : vector<128xf32>
    %150 = vector.multi_reduction <add>, %149, %cst_47 [0] : vector<8x128xf32> to vector<128xf32>
    %151 = vector.shape_cast %150 : vector<128xf32> to vector<1x128xf32>
    %cst_48 = arith.constant 1.250000e-01 : f32
    %152 = vector.broadcast %cst_48 : f32 to vector<1x128xf32>
    %153 = arith.mulf %151, %152 : vector<1x128xf32>
    %154 = arith.mulf %148, %148 : vector<1x128xf32>
    %155 = arith.subf %153, %154 : vector<1x128xf32>
    %cst_49 = arith.constant 0.000000e+00 : f32
    %156 = vector.broadcast %cst_49 : f32 to vector<1x128xf32>
    %157 = arith.maximumf %155, %156 : vector<1x128xf32>
    %cst_50 = arith.constant 9.99999974E-6 : f32
    %158 = vector.broadcast %cst_50 : f32 to vector<1x128xf32>
    %159 = arith.addf %157, %158 : vector<1x128xf32>
    %160 = math.rsqrt %159 : vector<1x128xf32>
    %161 = arith.mulf %143, %160 : vector<1x128xf32>
    %162 = arith.mulf %148, %161 : vector<1x128xf32>
    %163 = arith.subf %144, %162 : vector<1x128xf32>
    %164 = vector.broadcast %161 : vector<1x128xf32> to vector<8x128xf32>
    %165 = arith.mulf %142, %164 : vector<8x128xf32>
    %166 = vector.broadcast %163 : vector<1x128xf32> to vector<8x128xf32>
    %167 = arith.addf %165, %166 : vector<8x128xf32>
    %cst_51 = arith.constant 0.000000e+00 : f32
    %168 = vector.broadcast %cst_51 : f32 to vector<8x128xf32>
    %169 = arith.maximumf %167, %168 : vector<8x128xf32>
    %170 = arith.truncf %169 : vector<8x128xf32> to vector<8x128xbf16>
    %c0_52 = arith.constant 0 : index
    %c896 = arith.constant 896 : index
    %171 = vector.load %arg1[%c0_52, %c896] : memref<128x1536xbf16, #tpu.memory_space<vmem>>, vector<128x128xbf16>
    %cst_53 = arith.constant dense<0.000000e+00> : vector<8x128xf32>
    %172 = tpu.matmul %170, %171, %cst_53 {dimension_numbers = #tpu.dot_dimension_numbers<[1], [0], [0], [1], [0, 0, 1, 1], [], []>} : vector<8x128xbf16>, vector<128x128xbf16>, vector<8x128xf32> -> vector<8x128xf32>
    %173 = vector.extract_strided_slice %3 {offsets = [7, 0], sizes = [1, 128], strides = [1, 1]} : vector<32x128xf32> to vector<1x128xf32>
    %174 = vector.extract_strided_slice %3 {offsets = [16, 0], sizes = [1, 128], strides = [1, 1]} : vector<32x128xf32> to vector<1x128xf32>
    %cst_54 = arith.constant dense<0.000000e+00> : vector<128xf32>
    %175 = vector.multi_reduction <add>, %172, %cst_54 [0] : vector<8x128xf32> to vector<128xf32>
    %176 = vector.shape_cast %175 : vector<128xf32> to vector<1x128xf32>
    %cst_55 = arith.constant 1.250000e-01 : f32
    %177 = vector.broadcast %cst_55 : f32 to vector<1x128xf32>
    %178 = arith.mulf %176, %177 : vector<1x128xf32>
    %179 = arith.mulf %172, %172 : vector<8x128xf32>
    %cst_56 = arith.constant dense<0.000000e+00> : vector<128xf32>
    %180 = vector.multi_reduction <add>, %179, %cst_56 [0] : vector<8x128xf32> to vector<128xf32>
    %181 = vector.shape_cast %180 : vector<128xf32> to vector<1x128xf32>
    %cst_57 = arith.constant 1.250000e-01 : f32
    %182 = vector.broadcast %cst_57 : f32 to vector<1x128xf32>
    %183 = arith.mulf %181, %182 : vector<1x128xf32>
    %184 = arith.mulf %178, %178 : vector<1x128xf32>
    %185 = arith.subf %183, %184 : vector<1x128xf32>
    %cst_58 = arith.constant 0.000000e+00 : f32
    %186 = vector.broadcast %cst_58 : f32 to vector<1x128xf32>
    %187 = arith.maximumf %185, %186 : vector<1x128xf32>
    %cst_59 = arith.constant 9.99999974E-6 : f32
    %188 = vector.broadcast %cst_59 : f32 to vector<1x128xf32>
    %189 = arith.addf %187, %188 : vector<1x128xf32>
    %190 = math.rsqrt %189 : vector<1x128xf32>
    %191 = arith.mulf %173, %190 : vector<1x128xf32>
    %192 = arith.mulf %178, %191 : vector<1x128xf32>
    %193 = arith.subf %174, %192 : vector<1x128xf32>
    %194 = vector.broadcast %191 : vector<1x128xf32> to vector<8x128xf32>
    %195 = arith.mulf %172, %194 : vector<8x128xf32>
    %196 = vector.broadcast %193 : vector<1x128xf32> to vector<8x128xf32>
    %197 = arith.addf %195, %196 : vector<8x128xf32>
    %cst_60 = arith.constant 0.000000e+00 : f32
    %198 = vector.broadcast %cst_60 : f32 to vector<8x128xf32>
    %199 = arith.maximumf %197, %198 : vector<8x128xf32>
    %200 = arith.truncf %199 : vector<8x128xf32> to vector<8x128xbf16>
    %c0_61 = arith.constant 0 : index
    %c1024 = arith.constant 1024 : index
    %201 = vector.load %arg1[%c0_61, %c1024] : memref<128x1536xbf16, #tpu.memory_space<vmem>>, vector<128x128xbf16>
    %cst_62 = arith.constant dense<0.000000e+00> : vector<8x128xf32>
    %202 = tpu.matmul %200, %201, %cst_62 {dimension_numbers = #tpu.dot_dimension_numbers<[1], [0], [0], [1], [0, 0, 1, 1], [], []>} : vector<8x128xbf16>, vector<128x128xbf16>, vector<8x128xf32> -> vector<8x128xf32>
    %203 = vector.extract_strided_slice %3 {offsets = [8, 0], sizes = [1, 128], strides = [1, 1]} : vector<32x128xf32> to vector<1x128xf32>
    %204 = vector.extract_strided_slice %3 {offsets = [17, 0], sizes = [1, 128], strides = [1, 1]} : vector<32x128xf32> to vector<1x128xf32>
    %cst_63 = arith.constant dense<0.000000e+00> : vector<128xf32>
    %205 = vector.multi_reduction <add>, %202, %cst_63 [0] : vector<8x128xf32> to vector<128xf32>
    %206 = vector.shape_cast %205 : vector<128xf32> to vector<1x128xf32>
    %cst_64 = arith.constant 1.250000e-01 : f32
    %207 = vector.broadcast %cst_64 : f32 to vector<1x128xf32>
    %208 = arith.mulf %206, %207 : vector<1x128xf32>
    %209 = arith.mulf %202, %202 : vector<8x128xf32>
    %cst_65 = arith.constant dense<0.000000e+00> : vector<128xf32>
    %210 = vector.multi_reduction <add>, %209, %cst_65 [0] : vector<8x128xf32> to vector<128xf32>
    %211 = vector.shape_cast %210 : vector<128xf32> to vector<1x128xf32>
    %cst_66 = arith.constant 1.250000e-01 : f32
    %212 = vector.broadcast %cst_66 : f32 to vector<1x128xf32>
    %213 = arith.mulf %211, %212 : vector<1x128xf32>
    %214 = arith.mulf %208, %208 : vector<1x128xf32>
    %215 = arith.subf %213, %214 : vector<1x128xf32>
    %cst_67 = arith.constant 0.000000e+00 : f32
    %216 = vector.broadcast %cst_67 : f32 to vector<1x128xf32>
    %217 = arith.maximumf %215, %216 : vector<1x128xf32>
    %cst_68 = arith.constant 9.99999974E-6 : f32
    %218 = vector.broadcast %cst_68 : f32 to vector<1x128xf32>
    %219 = arith.addf %217, %218 : vector<1x128xf32>
    %220 = math.rsqrt %219 : vector<1x128xf32>
    %221 = arith.mulf %203, %220 : vector<1x128xf32>
    %222 = arith.mulf %208, %221 : vector<1x128xf32>
    %223 = arith.subf %204, %222 : vector<1x128xf32>
    %224 = vector.broadcast %221 : vector<1x128xf32> to vector<8x128xf32>
    %225 = arith.mulf %202, %224 : vector<8x128xf32>
    %226 = vector.broadcast %223 : vector<1x128xf32> to vector<8x128xf32>
    %227 = arith.addf %225, %226 : vector<8x128xf32>
    %cst_69 = arith.constant 0.000000e+00 : f32
    %228 = vector.broadcast %cst_69 : f32 to vector<8x128xf32>
    %229 = arith.maximumf %227, %228 : vector<8x128xf32>
    %230 = arith.truncf %229 : vector<8x128xf32> to vector<8x128xbf16>
    %c0_70 = arith.constant 0 : index
    %c1152 = arith.constant 1152 : index
    %231 = vector.load %arg1[%c0_70, %c1152] : memref<128x1536xbf16, #tpu.memory_space<vmem>>, vector<128x128xbf16>
    %cst_71 = arith.constant dense<0.000000e+00> : vector<8x128xf32>
    %232 = tpu.matmul %230, %231, %cst_71 {dimension_numbers = #tpu.dot_dimension_numbers<[1], [0], [0], [1], [0, 0, 1, 1], [], []>} : vector<8x128xbf16>, vector<128x128xbf16>, vector<8x128xf32> -> vector<8x128xf32>
    %233 = vector.extract_strided_slice %3 {offsets = [9, 0], sizes = [1, 128], strides = [1, 1]} : vector<32x128xf32> to vector<1x128xf32>
    %234 = vector.extract_strided_slice %3 {offsets = [18, 0], sizes = [1, 128], strides = [1, 1]} : vector<32x128xf32> to vector<1x128xf32>
    %cst_72 = arith.constant dense<0.000000e+00> : vector<128xf32>
    %235 = vector.multi_reduction <add>, %232, %cst_72 [0] : vector<8x128xf32> to vector<128xf32>
    %236 = vector.shape_cast %235 : vector<128xf32> to vector<1x128xf32>
    %cst_73 = arith.constant 1.250000e-01 : f32
    %237 = vector.broadcast %cst_73 : f32 to vector<1x128xf32>
    %238 = arith.mulf %236, %237 : vector<1x128xf32>
    %239 = arith.mulf %232, %232 : vector<8x128xf32>
    %cst_74 = arith.constant dense<0.000000e+00> : vector<128xf32>
    %240 = vector.multi_reduction <add>, %239, %cst_74 [0] : vector<8x128xf32> to vector<128xf32>
    %241 = vector.shape_cast %240 : vector<128xf32> to vector<1x128xf32>
    %cst_75 = arith.constant 1.250000e-01 : f32
    %242 = vector.broadcast %cst_75 : f32 to vector<1x128xf32>
    %243 = arith.mulf %241, %242 : vector<1x128xf32>
    %244 = arith.mulf %238, %238 : vector<1x128xf32>
    %245 = arith.subf %243, %244 : vector<1x128xf32>
    %cst_76 = arith.constant 0.000000e+00 : f32
    %246 = vector.broadcast %cst_76 : f32 to vector<1x128xf32>
    %247 = arith.maximumf %245, %246 : vector<1x128xf32>
    %cst_77 = arith.constant 9.99999974E-6 : f32
    %248 = vector.broadcast %cst_77 : f32 to vector<1x128xf32>
    %249 = arith.addf %247, %248 : vector<1x128xf32>
    %250 = math.rsqrt %249 : vector<1x128xf32>
    %251 = arith.mulf %233, %250 : vector<1x128xf32>
    %252 = arith.mulf %238, %251 : vector<1x128xf32>
    %253 = arith.subf %234, %252 : vector<1x128xf32>
    %254 = vector.broadcast %251 : vector<1x128xf32> to vector<8x128xf32>
    %255 = arith.mulf %232, %254 : vector<8x128xf32>
    %256 = vector.broadcast %253 : vector<1x128xf32> to vector<8x128xf32>
    %257 = arith.addf %255, %256 : vector<8x128xf32>
    %cst_78 = arith.constant 0.000000e+00 : f32
    %258 = vector.broadcast %cst_78 : f32 to vector<8x128xf32>
    %259 = arith.maximumf %257, %258 : vector<8x128xf32>
    %260 = arith.truncf %259 : vector<8x128xf32> to vector<8x128xbf16>
    %c0_79 = arith.constant 0 : index
    %c1280 = arith.constant 1280 : index
    %261 = vector.load %arg1[%c0_79, %c1280] : memref<128x1536xbf16, #tpu.memory_space<vmem>>, vector<128x128xbf16>
    %cst_80 = arith.constant dense<0.000000e+00> : vector<8x128xf32>
    %262 = tpu.matmul %260, %261, %cst_80 {dimension_numbers = #tpu.dot_dimension_numbers<[1], [0], [0], [1], [0, 0, 1, 1], [], []>} : vector<8x128xbf16>, vector<128x128xbf16>, vector<8x128xf32> -> vector<8x128xf32>
    %263 = vector.extract_strided_slice %3 {offsets = [10, 0], sizes = [1, 128], strides = [1, 1]} : vector<32x128xf32> to vector<1x128xf32>
    %264 = vector.extract_strided_slice %3 {offsets = [19, 0], sizes = [1, 128], strides = [1, 1]} : vector<32x128xf32> to vector<1x128xf32>
    %cst_81 = arith.constant dense<0.000000e+00> : vector<128xf32>
    %265 = vector.multi_reduction <add>, %262, %cst_81 [0] : vector<8x128xf32> to vector<128xf32>
    %266 = vector.shape_cast %265 : vector<128xf32> to vector<1x128xf32>
    %cst_82 = arith.constant 1.250000e-01 : f32
    %267 = vector.broadcast %cst_82 : f32 to vector<1x128xf32>
    %268 = arith.mulf %266, %267 : vector<1x128xf32>
    %269 = arith.mulf %262, %262 : vector<8x128xf32>
    %cst_83 = arith.constant dense<0.000000e+00> : vector<128xf32>
    %270 = vector.multi_reduction <add>, %269, %cst_83 [0] : vector<8x128xf32> to vector<128xf32>
    %271 = vector.shape_cast %270 : vector<128xf32> to vector<1x128xf32>
    %cst_84 = arith.constant 1.250000e-01 : f32
    %272 = vector.broadcast %cst_84 : f32 to vector<1x128xf32>
    %273 = arith.mulf %271, %272 : vector<1x128xf32>
    %274 = arith.mulf %268, %268 : vector<1x128xf32>
    %275 = arith.subf %273, %274 : vector<1x128xf32>
    %cst_85 = arith.constant 0.000000e+00 : f32
    %276 = vector.broadcast %cst_85 : f32 to vector<1x128xf32>
    %277 = arith.maximumf %275, %276 : vector<1x128xf32>
    %cst_86 = arith.constant 9.99999974E-6 : f32
    %278 = vector.broadcast %cst_86 : f32 to vector<1x128xf32>
    %279 = arith.addf %277, %278 : vector<1x128xf32>
    %280 = math.rsqrt %279 : vector<1x128xf32>
    %281 = arith.mulf %263, %280 : vector<1x128xf32>
    %282 = arith.mulf %268, %281 : vector<1x128xf32>
    %283 = arith.subf %264, %282 : vector<1x128xf32>
    %284 = vector.broadcast %281 : vector<1x128xf32> to vector<8x128xf32>
    %285 = arith.mulf %262, %284 : vector<8x128xf32>
    %286 = vector.broadcast %283 : vector<1x128xf32> to vector<8x128xf32>
    %287 = arith.addf %285, %286 : vector<8x128xf32>
    %c0_87 = arith.constant 0 : index
    %c0_88 = arith.constant 0 : index
    %288 = vector.load %arg2[%c0_87, %c0_88] : memref<8x384xf32, #tpu.memory_space<vmem>>, vector<8x128xf32>
    tpu.vector_store %arg2[%c0_87, %c0_88], %287 {strides = array<i32>} : memref<8x384xf32, #tpu.memory_space<vmem>>, vector<8x128xf32>,
    %c0_89 = arith.constant 0 : index
    %c128_90 = arith.constant 128 : index
    %289 = vector.load %arg2[%c0_89, %c128_90] : memref<8x384xf32, #tpu.memory_space<vmem>>, vector<8x128xf32>
    tpu.vector_store %arg2[%c0_89, %c128_90], %130 {strides = array<i32>} : memref<8x384xf32, #tpu.memory_space<vmem>>, vector<8x128xf32>,
    %c0_91 = arith.constant 0 : index
    %c256_92 = arith.constant 256 : index
    %290 = vector.load %arg2[%c0_91, %c256_92] : memref<8x384xf32, #tpu.memory_space<vmem>>, vector<8x128xf32>
    tpu.vector_store %arg2[%c0_91, %c256_92], %134 {strides = array<i32>} : memref<8x384xf32, #tpu.memory_space<vmem>>, vector<8x128xf32>,
    return
  }
}

</mosaic_0001>

<llo_original>
// kernel: tpu_custom_call.1
$region0: #{tpu_custom_call.1}
  #allocation0 [shape = 'u32[]', space=smem, size = 0x4, offset = 0x4, fixed_abs, tag = 'smem constant byte address 0x4 - core index']
  #allocation1 [shape = 'u32[72,128]{1,0:T(1,128)}', space=vmem, size = 0x9000, scoped, tag = 'internal scratch']
  %s0 = inlined_call_operand.hbm [shape: f32[8,256], index: 0, kind: input, shape index: {}]
  %s1 = inlined_call_operand.hbm [shape: bf16[128,1536], index: 1, kind: input, shape index: {}]
  %s2 = inlined_call_operand.hbm [shape: f32[8,384], index: 2, kind: output, shape index: {}]
  %s3 = sld [smem:[#allocation0]]
  $region26: #{tpu_custom_call.1} parent=0
    _
  %s5 = ssub.s32 1, %s3
  %s6 = scalar_select 0, %s5, %s3
  $region1: #{tpu_custom_call.1} parent=0
    #allocation2 [shape = 'u8[8192]{0}', space=vmem, size = 0x2000, scoped, tag = 'input window, operand 0, single buffered']
    #allocation3 [shape = 's32[1]{0}', space=sflag, size = 0x4, scoped, tag = 'scoped memory for tpu_custom_call.1']
    #allocation4 [shape = 's32[1]{0}', space=sflag, size = 0x4, scoped, tag = 'scoped memory for tpu_custom_call.1']
    #allocation5 [shape = 'u8[393216]{0}', space=vmem, size = 0x60000, scoped, tag = 'input window, operand 1, single buffered']
    #allocation6 [shape = 's32[1]{0}', space=sflag, size = 0x4, scoped, tag = 'scoped memory for tpu_custom_call.1']
    #allocation7 [shape = 'u8[12288]{0}', space=vmem, size = 0x3000, scoped, tag = 'output window, operand 0, single buffered']
    %7 = vsyncpa [#allocation3], 0
    %8 = vsyncpa [#allocation6], 0
    %9 = vsyncpa [#allocation4], 0
    // Predicated region
    $region2: #{tpu_custom_call.1} parent=1 // pred_check
      _
    $region3: #{tpu_custom_call.1} parent=1 // pred_check_branch
      %11 = sbr.rel (0) target = $region5
    $region4: #{tpu_custom_call.1} parent=1 // pred_region
      %13 = vsyncadd [#allocation3], 0
      %s15 = sshll.u32 %s0, 4
      %s16 = int_to_ptr.hbm [resolvable:$true] %s15
      %s17 = sshll.u32 [#allocation2], 4
      %s18 = int_to_ptr.vmem [resolvable:$true] %s17
      %20 = dma.hbm_to_vmem [thread:$0]  %s16, 256, %s18, [#allocation3]
    $region5: #{tpu_custom_call.1} parent=1 // pred_fallthru
      _
    // Predicated region
    $region6: #{tpu_custom_call.1} parent=1 // pred_check
      _
    $region7: #{tpu_custom_call.1} parent=1 // pred_check_branch
      %22 = sbr.rel (0) target = $region9
    $region8: #{tpu_custom_call.1} parent=1 // pred_region
      %24 = vsyncadd [#allocation6], 0
      %s25 = sshll.u32 %s1, 4
      %s26 = int_to_ptr.hbm [resolvable:$true] %s25
      %s27 = sshll.u32 [#allocation5], 4
      %s28 = int_to_ptr.vmem [resolvable:$true] %s27
      %33 = dma.hbm_to_vmem [thread:$0]  %s26, 12288, %s28, [#allocation6], 768, 768, 48
    $region9: #{tpu_custom_call.1} parent=1 // pred_fallthru
      _
    // Predicated region
    $region10: #{tpu_custom_call.1} parent=1 // pred_check
      _
    $region11: #{tpu_custom_call.1} parent=1 // pred_check_branch
      %35 = sbr.rel (0) target = $region13
    $region12: #{tpu_custom_call.1} parent=1 // pred_region
      %37 = dma.done [#allocation3], 256
    $region13: #{tpu_custom_call.1} parent=1 // pred_fallthru
      _
    // Predicated region
    $region14: #{tpu_custom_call.1} parent=1 // pred_check
      _
    $region15: #{tpu_custom_call.1} parent=1 // pred_check_branch
      %39 = sbr.rel (0) target = $region17
    $region16: #{tpu_custom_call.1} parent=1 // pred_region
      %41 = dma.done [#allocation6], 12288
    $region17: #{tpu_custom_call.1} parent=1 // pred_fallthru
      _
    %v42 = vld [vmem:[#allocation2] sm:$0xff]
    %v43 = vld [vmem:[#allocation2 + $0x8] sm:$0xff]
    %v44 = vld [vmem:[#allocation5 + $0x2c] sm:$0xf]
    %v45 = vld [vmem:[#allocation5 + $0x5c] sm:$0xf]
    %v46 = vld [vmem:[#allocation5 + $0x8c] sm:$0xf]
    %v47 = vunpack.c.l.bf16 %v44
    %v48 = vunpack.c.l.bf16 %v45
    %v49 = vunpack.c.l.bf16 %v46
    %v50 = vpack.c.bf16 %v42, %v42
    %v51 = vld [vmem:[#allocation5] sm:$0xf]
    %v52 = vld [vmem:[#allocation5 + $0x30] sm:$0xf]
    %v53 = vld [vmem:[#allocation5 + $0x60] sm:$0xf]
    %v54 = vld [vmem:[#allocation5 + $0x90] sm:$0xf]
    %v55 = vld [vmem:[#allocation5 + $0xc0] sm:$0xf]
    %v56 = vld [vmem:[#allocation5 + $0xf0] sm:$0xf]
    %v57 = vld [vmem:[#allocation5 + $0x120] sm:$0xf]
    %v58 = vld [vmem:[#allocation5 + $0x150] sm:$0xf]
    %v59 = vld [vmem:[#allocation5 + $0x180] sm:$0xf]
    %v60 = vld [vmem:[#allocation5 + $0x1b0] sm:$0xf]
    %v61 = vld [vmem:[#allocation5 + $0x1e0] sm:$0xf]
    %v62 = vld [vmem:[#allocation5 + $0x210] sm:$0xf]
    %v63 = vld [vmem:[#allocation5 + $0x240] sm:$0xf]
    %v64 = vld [vmem:[#allocation5 + $0x270] sm:$0xf]
    %v65 = vld [vmem:[#allocation5 + $0x2a0] sm:$0xf]
    %v66 = vld [vmem:[#allocation5 + $0x2d0] sm:$0xf]
    %v83 = vunpack.c.l.b16 %v51
    %v84 = vunpack.c.l.b16 %v52
    %v85 = vunpack.c.l.b16 %v53
    %v86 = vunpack.c.l.b16 %v54
    %v87 = vunpack.c.l.b16 %v55
    %v88 = vunpack.c.l.b16 %v56
    %v89 = vunpack.c.l.b16 %v57
    %v90 = vunpack.c.l.b16 %v58
    %v91 = vunpack.c.l.b16 %v59
    %v92 = vunpack.c.l.b16 %v60
    %v93 = vunpack.c.l.b16 %v61
    %v94 = vunpack.c.l.b16 %v62
    %v95 = vunpack.c.l.b16 %v63
    %v96 = vunpack.c.l.b16 %v64
    %v97 = vunpack.c.l.b16 %v65
    %v98 = vunpack.c.l.b16 %v66
    %v99 = vpack.c.b16 %v84, %v83
    %v100 = vpack.c.b16 %v86, %v85
    %v101 = vpack.c.b16 %v88, %v87
    %v102 = vpack.c.b16 %v90, %v89
    %v103 = vpack.c.b16 %v92, %v91
    %v104 = vpack.c.b16 %v94, %v93
    %v105 = vpack.c.b16 %v96, %v95
    %v106 = vpack.c.b16 %v98, %v97
    %115 = vmatpush.bf16.msra.mxu0 %v106
    %116 = vmatpush.bf16.msra.mxu0 %v105
    %117 = vmatpush.bf16.msra.mxu0 %v104
    %118 = vmatpush.bf16.msra.mxu0 %v103
    %119 = vmatpush.bf16.msra.mxu0 %v102
    %120 = vmatpush.bf16.msra.mxu0 %v101
    %121 = vmatpush.bf16.msra.mxu0 %v100
    %122 = vmatpush.bf16.msra.mxu0 %v99
    %123 = vmatmul.bf16.gmra.mxu0 %v50
    %v124 = vpop.f32.mrf.mxu0
    %v125 = vadd.f32 0.0, %v124
    %v126 = vpop.f32.mrf.mxu0
    %127 = vdwg.mxu0
    %v128 = vrot.slane %v125, 4
    %v129 = vadd.f32 %v125, %v128
    %v130 = vrot.slane %v129, 2
    %v131 = vadd.f32 %v129, %v130
    %v132 = vrot.slane %v131, 1
    %v133 = vadd.f32 %v131, %v132
    %v134 = vmul.f32 %v133, 0.125
    %v135 = vmul.f32 %v125, %v125
    %v136 = vrot.slane %v135, 4
    %v137 = vadd.f32 %v135, %v136
    %v138 = vrot.slane %v137, 2
    %v139 = vadd.f32 %v137, %v138
    %v140 = vrot.slane %v139, 1
    %v141 = vadd.f32 %v139, %v140
    %v142 = vmul.f32 %v141, 0.125
    %v143 = vmul.f32 %v134, %v134
    %v144 = vsub.f32 %v142, %v143
    %v145 = vmax.f32 %v144, 0.0
    %v146 = vadd.f32 %v145, 1e-05
    %v147 = vrsqrt.pop %v146
    %v148 = vmul.f32 %v147, %v146
    %v149 = vmul.f32 %v148, %v147
    %v150 = vmul.f32 0.5, %v149
    %v151 = vsub.f32 1.5, %v150
    %v152 = vmul.f32 %v147, %v151
    %vm153 = vweird.f32 %v146
    %vm154 = vweird.f32 %v147
    %vm155 = vmor %vm153, %vm154
    %v156 = vsel %vm155, %v147, %v152
    %v157 = vmul.f32 %v47, %v156
    %v158 = vmul.f32 %v134, %v157
    %v160 = vrot.slane %v158, 7
    %v162 = vsub.f32 %v48, %v160
    %v163 = vperm.slane %v157, 2
    %v164 = vmul.f32 %v125, %v163
    %v165 = vperm.slane %v162, 3
    %v166 = vadd.f32 %v164, %v165
    %v167 = vmax.f32 %v166, 0.0
    %v168 = vpack.c.bf16 %v167, %v167
    %v169 = vld [vmem:[#allocation5 + $0x4] sm:$0xf]
    %v170 = vld [vmem:[#allocation5 + $0x34] sm:$0xf]
    %v171 = vld [vmem:[#allocation5 + $0x64] sm:$0xf]
    %v172 = vld [vmem:[#allocation5 + $0x94] sm:$0xf]
    %v173 = vld [vmem:[#allocation5 + $0xc4] sm:$0xf]
    %v174 = vld [vmem:[#allocation5 + $0xf4] sm:$0xf]
    %v175 = vld [vmem:[#allocation5 + $0x124] sm:$0xf]
    %v176 = vld [vmem:[#allocation5 + $0x154] sm:$0xf]
    %v177 = vld [vmem:[#allocation5 + $0x184] sm:$0xf]
    %v178 = vld [vmem:[#allocation5 + $0x1b4] sm:$0xf]
    %v179 = vld [vmem:[#allocation5 + $0x1e4] sm:$0xf]
    %v180 = vld [vmem:[#allocation5 + $0x214] sm:$0xf]
    %v181 = vld [vmem:[#allocation5 + $0x244] sm:$0xf]
    %v182 = vld [vmem:[#allocation5 + $0x274] sm:$0xf]
    %v183 = vld [vmem:[#allocation5 + $0x2a4] sm:$0xf]
    %v184 = vld [vmem:[#allocation5 + $0x2d4] sm:$0xf]
    %v201 = vunpack.c.l.b16 %v169
    %v202 = vunpack.c.l.b16 %v170
    %v203 = vunpack.c.l.b16 %v171
    %v204 = vunpack.c.l.b16 %v172
    %v205 = vunpack.c.l.b16 %v173
    %v206 = vunpack.c.l.b16 %v174
    %v207 = vunpack.c.l.b16 %v175
    %v208 = vunpack.c.l.b16 %v176
    %v209 = vunpack.c.l.b16 %v177
    %v210 = vunpack.c.l.b16 %v178
    %v211 = vunpack.c.l.b16 %v179
    %v212 = vunpack.c.l.b16 %v180
    %v213 = vunpack.c.l.b16 %v181
    %v214 = vunpack.c.l.b16 %v182
    %v215 = vunpack.c.l.b16 %v183
    %v216 = vunpack.c.l.b16 %v184
    %v217 = vpack.c.b16 %v202, %v201
    %v218 = vpack.c.b16 %v204, %v203
    %v219 = vpack.c.b16 %v206, %v205
    %v220 = vpack.c.b16 %v208, %v207
    %v221 = vpack.c.b16 %v210, %v209
    %v222 = vpack.c.b16 %v212, %v211
    %v223 = vpack.c.b16 %v214, %v213
    %v224 = vpack.c.b16 %v216, %v215
    %233 = vmatpush.bf16.msra.mxu0 %v224
    %234 = vmatpush.bf16.msra.mxu0 %v223
    %235 = vmatpush.bf16.msra.mxu0 %v222
    %236 = vmatpush.bf16.msra.mxu0 %v221
    %237 = vmatpush.bf16.msra.mxu0 %v220
    %238 = vmatpush.bf16.msra.mxu0 %v219
    %239 = vmatpush.bf16.msra.mxu0 %v218
    %240 = vmatpush.bf16.msra.mxu0 %v217
    %241 = vmatmul.bf16.gmra.mxu0 %v168
    %v242 = vpop.f32.mrf.mxu0
    %v243 = vadd.f32 0.0, %v242
    %v244 = vpop.f32.mrf.mxu0
    %245 = vdwg.mxu0
    %v246 = vrot.slane %v243, 4
    %v247 = vadd.f32 %v243, %v246
    %v248 = vrot.slane %v247, 2
    %v249 = vadd.f32 %v247, %v248
    %v250 = vrot.slane %v249, 1
    %v251 = vadd.f32 %v249, %v250
    %v252 = vmul.f32 %v251, 0.125
    %v253 = vmul.f32 %v243, %v243
    %v254 = vrot.slane %v253, 4
    %v255 = vadd.f32 %v253, %v254
    %v256 = vrot.slane %v255, 2
    %v257 = vadd.f32 %v255, %v256
    %v258 = vrot.slane %v257, 1
    %v259 = vadd.f32 %v257, %v258
    %v260 = vmul.f32 %v259, 0.125
    %v261 = vmul.f32 %v252, %v252
    %v262 = vsub.f32 %v260, %v261
    %v263 = vmax.f32 %v262, 0.0
    %v264 = vadd.f32 %v263, 1e-05
    %v265 = vrsqrt.pop %v264
    %v266 = vmul.f32 %v265, %v264
    %v267 = vmul.f32 %v266, %v265
    %v268 = vmul.f32 0.5, %v267
    %v269 = vsub.f32 1.5, %v268
    %v270 = vmul.f32 %v265, %v269
    %vm271 = vweird.f32 %v264
    %vm272 = vweird.f32 %v265
    %vm273 = vmor %vm271, %vm272
    %v274 = vsel %vm273, %v265, %v270
    %v275 = vmul.f32 %v47, %v274
    %v276 = vmul.f32 %v252, %v275
    %v278 = vrot.slane %v276, 7
    %v280 = vsub.f32 %v48, %v278
    %v281 = vperm.slane %v275, 3
    %v282 = vmul.f32 %v243, %v281
    %v283 = vperm.slane %v280, 4
    %v284 = vadd.f32 %v282, %v283
    %v285 = vmax.f32 %v284, 0.0
    %v286 = vpack.c.bf16 %v285, %v285
    %v287 = vld [vmem:[#allocation5 + $0x8] sm:$0xf]
    %v288 = vld [vmem:[#allocation5 + $0x38] sm:$0xf]
    %v289 = vld [vmem:[#allocation5 + $0x68] sm:$0xf]
    %v290 = vld [vmem:[#allocation5 + $0x98] sm:$0xf]
    %v291 = vld [vmem:[#allocation5 + $0xc8] sm:$0xf]
    %v292 = vld [vmem:[#allocation5 + $0xf8] sm:$0xf]
    %v293 = vld [vmem:[#allocation5 + $0x128] sm:$0xf]
    %v294 = vld [vmem:[#allocation5 + $0x158] sm:$0xf]
    %v295 = vld [vmem:[#allocation5 + $0x188] sm:$0xf]
    %v296 = vld [vmem:[#allocation5 + $0x1b8] sm:$0xf]
    %v297 = vld [vmem:[#allocation5 + $0x1e8] sm:$0xf]
    %v298 = vld [vmem:[#allocation5 + $0x218] sm:$0xf]
    %v299 = vld [vmem:[#allocation5 + $0x248] sm:$0xf]
    %v300 = vld [vmem:[#allocation5 + $0x278] sm:$0xf]
    %v301 = vld [vmem:[#allocation5 + $0x2a8] sm:$0xf]
    %v302 = vld [vmem:[#allocation5 + $0x2d8] sm:$0xf]
    %v319 = vunpack.c.l.b16 %v287
    %v320 = vunpack.c.l.b16 %v288
    %v321 = vunpack.c.l.b16 %v289
    %v322 = vunpack.c.l.b16 %v290
    %v323 = vunpack.c.l.b16 %v291
    %v324 = vunpack.c.l.b16 %v292
    %v325 = vunpack.c.l.b16 %v293
    %v326 = vunpack.c.l.b16 %v294
    %v327 = vunpack.c.l.b16 %v295
    %v328 = vunpack.c.l.b16 %v296
    %v329 = vunpack.c.l.b16 %v297
    %v330 = vunpack.c.l.b16 %v298
    %v331 = vunpack.c.l.b16 %v299
    %v332 = vunpack.c.l.b16 %v300
    %v333 = vunpack.c.l.b16 %v301
    %v334 = vunpack.c.l.b16 %v302
    %v335 = vpack.c.b16 %v320, %v319
    %v336 = vpack.c.b16 %v322, %v321
    %v337 = vpack.c.b16 %v324, %v323
    %v338 = vpack.c.b16 %v326, %v325
    %v339 = vpack.c.b16 %v328, %v327
    %v340 = vpack.c.b16 %v330, %v329
    %v341 = vpack.c.b16 %v332, %v331
    %v342 = vpack.c.b16 %v334, %v333
    %351 = vmatpush.bf16.msra.mxu0 %v342
    %352 = vmatpush.bf16.msra.mxu0 %v341
    %353 = vmatpush.bf16.msra.mxu0 %v340
    %354 = vmatpush.bf16.msra.mxu0 %v339
    %355 = vmatpush.bf16.msra.mxu0 %v338
    %356 = vmatpush.bf16.msra.mxu0 %v337
    %357 = vmatpush.bf16.msra.mxu0 %v336
    %358 = vmatpush.bf16.msra.mxu0 %v335
    %359 = vmatmul.bf16.gmra.mxu0 %v286
    %v360 = vpop.f32.mrf.mxu0
    %v361 = vadd.f32 0.0, %v360
    %v362 = vpop.f32.mrf.mxu0
    %363 = vdwg.mxu0
    %v364 = vrot.slane %v361, 4
    %v365 = vadd.f32 %v361, %v364
    %v366 = vrot.slane %v365, 2
    %v367 = vadd.f32 %v365, %v366
    %v368 = vrot.slane %v367, 1
    %v369 = vadd.f32 %v367, %v368
    %v370 = vmul.f32 %v369, 0.125
    %v371 = vmul.f32 %v361, %v361
    %v372 = vrot.slane %v371, 4
    %v373 = vadd.f32 %v371, %v372
    %v374 = vrot.slane %v373, 2
    %v375 = vadd.f32 %v373, %v374
    %v376 = vrot.slane %v375, 1
    %v377 = vadd.f32 %v375, %v376
    %v378 = vmul.f32 %v377, 0.125
    %v379 = vmul.f32 %v370, %v370
    %v380 = vsub.f32 %v378, %v379
    %v381 = vmax.f32 %v380, 0.0
    %v382 = vadd.f32 %v381, 1e-05
    %v383 = vrsqrt.pop %v382
    %v384 = vmul.f32 %v383, %v382
    %v385 = vmul.f32 %v384, %v383
    %v386 = vmul.f32 0.5, %v385
    %v387 = vsub.f32 1.5, %v386
    %v388 = vmul.f32 %v383, %v387
    %vm389 = vweird.f32 %v382
    %vm390 = vweird.f32 %v383
    %vm391 = vmor %vm389, %vm390
    %v392 = vsel %vm391, %v383, %v388
    %v393 = vmul.f32 %v47, %v392
    %v394 = vmul.f32 %v370, %v393
    %v396 = vrot.slane %v394, 7
    %v398 = vsub.f32 %v48, %v396
    %v399 = vperm.slane %v393, 4
    %v400 = vmul.f32 %v361, %v399
    %v401 = vperm.slane %v398, 5
    %v402 = vadd.f32 %v400, %v401
    %v403 = vmax.f32 %v402, 0.0
    %v404 = vpack.c.bf16 %v403, %v403
    %v405 = vld [vmem:[#allocation5 + $0xc] sm:$0xf]
    %v406 = vld [vmem:[#allocation5 + $0x3c] sm:$0xf]
    %v407 = vld [vmem:[#allocation5 + $0x6c] sm:$0xf]
    %v408 = vld [vmem:[#allocation5 + $0x9c] sm:$0xf]
    %v409 = vld [vmem:[#allocation5 + $0xcc] sm:$0xf]
    %v410 = vld [vmem:[#allocation5 + $0xfc] sm:$0xf]
    %v411 = vld [vmem:[#allocation5 + $0x12c] sm:$0xf]
    %v412 = vld [vmem:[#allocation5 + $0x15c] sm:$0xf]
    %v413 = vld [vmem:[#allocation5 + $0x18c] sm:$0xf]
    %v414 = vld [vmem:[#allocation5 + $0x1bc] sm:$0xf]
    %v415 = vld [vmem:[#allocation5 + $0x1ec] sm:$0xf]
    %v416 = vld [vmem:[#allocation5 + $0x21c] sm:$0xf]
    %v417 = vld [vmem:[#allocation5 + $0x24c] sm:$0xf]
    %v418 = vld [vmem:[#allocation5 + $0x27c] sm:$0xf]
    %v419 = vld [vmem:[#allocation5 + $0x2ac] sm:$0xf]
    %v420 = vld [vmem:[#allocation5 + $0x2dc] sm:$0xf]
    %v437 = vunpack.c.l.b16 %v405
    %v438 = vunpack.c.l.b16 %v406
    %v439 = vunpack.c.l.b16 %v407
    %v440 = vunpack.c.l.b16 %v408
    %v441 = vunpack.c.l.b16 %v409
    %v442 = vunpack.c.l.b16 %v410
    %v443 = vunpack.c.l.b16 %v411
    %v444 = vunpack.c.l.b16 %v412
    %v445 = vunpack.c.l.b16 %v413
    %v446 = vunpack.c.l.b16 %v414
    %v447 = vunpack.c.l.b16 %v415
    %v448 = vunpack.c.l.b16 %v416
    %v449 = vunpack.c.l.b16 %v417
    %v450 = vunpack.c.l.b16 %v418
    %v451 = vunpack.c.l.b16 %v419
    %v452 = vunpack.c.l.b16 %v420
    %v453 = vpack.c.b16 %v438, %v437
    %v454 = vpack.c.b16 %v440, %v439
    %v455 = vpack.c.b16 %v442, %v441
    %v456 = vpack.c.b16 %v444, %v443
    %v457 = vpack.c.b16 %v446, %v445
    %v458 = vpack.c.b16 %v448, %v447
    %v459 = vpack.c.b16 %v450, %v449
    %v460 = vpack.c.b16 %v452, %v451
    %469 = vmatpush.bf16.msra.mxu0 %v460
    %470 = vmatpush.bf16.msra.mxu0 %v459
    %471 = vmatpush.bf16.msra.mxu0 %v458
    %472 = vmatpush.bf16.msra.mxu0 %v457
    %473 = vmatpush.bf16.msra.mxu0 %v456
    %474 = vmatpush.bf16.msra.mxu0 %v455
    %475 = vmatpush.bf16.msra.mxu0 %v454
    %476 = vmatpush.bf16.msra.mxu0 %v453
    %477 = vmatmul.bf16.gmra.mxu0 %v404
    %v478 = vpop.f32.mrf.mxu0
    %v479 = vadd.f32 0.0, %v478
    %v480 = vpop.f32.mrf.mxu0
    %481 = vdwg.mxu0
    %v482 = vrot.slane %v479, 4
    %v483 = vadd.f32 %v479, %v482
    %v484 = vrot.slane %v483, 2
    %v485 = vadd.f32 %v483, %v484
    %v486 = vrot.slane %v485, 1
    %v487 = vadd.f32 %v485, %v486
    %v488 = vmul.f32 %v487, 0.125
    %v489 = vmul.f32 %v479, %v479
    %v490 = vrot.slane %v489, 4
    %v491 = vadd.f32 %v489, %v490
    %v492 = vrot.slane %v491, 2
    %v493 = vadd.f32 %v491, %v492
    %v494 = vrot.slane %v493, 1
    %v495 = vadd.f32 %v493, %v494
    %v496 = vmul.f32 %v495, 0.125
    %v497 = vmul.f32 %v488, %v488
    %v498 = vsub.f32 %v496, %v497
    %v499 = vmax.f32 %v498, 0.0
    %v500 = vadd.f32 %v499, 1e-05
    %v501 = vrsqrt.pop %v500
    %v502 = vmul.f32 %v501, %v500
    %v503 = vmul.f32 %v502, %v501
    %v504 = vmul.f32 0.5, %v503
    %v505 = vsub.f32 1.5, %v504
    %v506 = vmul.f32 %v501, %v505
    %vm507 = vweird.f32 %v500
    %vm508 = vweird.f32 %v501
    %vm509 = vmor %vm507, %vm508
    %v510 = vsel %vm509, %v501, %v506
    %v511 = vmul.f32 %v47, %v510
    %v512 = vmul.f32 %v488, %v511
    %v514 = vrot.slane %v512, 7
    %v516 = vsub.f32 %v48, %v514
    %v517 = vperm.slane %v511, 5
    %v518 = vmul.f32 %v479, %v517
    %v519 = vperm.slane %v516, 6
    %v520 = vadd.f32 %v518, %v519
    %v521 = vmax.f32 %v520, 0.0
    %v522 = vpack.c.bf16 %v521, %v521
    %v523 = vld [vmem:[#allocation5 + $0x10] sm:$0xff]
    %v524 = vld [vmem:[#allocation5 + $0x40] sm:$0xff]
    %v525 = vld [vmem:[#allocation5 + $0x70] sm:$0xff]
    %v526 = vld [vmem:[#allocation5 + $0xa0] sm:$0xff]
    %v527 = vld [vmem:[#allocation5 + $0xd0] sm:$0xff]
    %v528 = vld [vmem:[#allocation5 + $0x100] sm:$0xff]
    %v529 = vld [vmem:[#allocation5 + $0x130] sm:$0xff]
    %v530 = vld [vmem:[#allocation5 + $0x160] sm:$0xff]
    %v531 = vld [vmem:[#allocation5 + $0x190] sm:$0xff]
    %v532 = vld [vmem:[#allocation5 + $0x1c0] sm:$0xff]
    %v533 = vld [vmem:[#allocation5 + $0x1f0] sm:$0xff]
    %v534 = vld [vmem:[#allocation5 + $0x220] sm:$0xff]
    %v535 = vld [vmem:[#allocation5 + $0x250] sm:$0xff]
    %v536 = vld [vmem:[#allocation5 + $0x280] sm:$0xff]
    %v537 = vld [vmem:[#allocation5 + $0x2b0] sm:$0xff]
    %v538 = vld [vmem:[#allocation5 + $0x2e0] sm:$0xff]
    %v555 = vunpack.c.l.b16 %v523
    %v556 = vunpack.c.h.b16 %v523
    %v557 = vunpack.c.l.b16 %v524
    %v558 = vunpack.c.h.b16 %v524
    %v559 = vunpack.c.l.b16 %v525
    %v560 = vunpack.c.h.b16 %v525
    %v561 = vunpack.c.l.b16 %v526
    %v562 = vunpack.c.h.b16 %v526
    %v563 = vunpack.c.l.b16 %v527
    %v564 = vunpack.c.h.b16 %v527
    %v565 = vunpack.c.l.b16 %v528
    %v566 = vunpack.c.h.b16 %v528
    %v567 = vunpack.c.l.b16 %v529
    %v568 = vunpack.c.h.b16 %v529
    %v569 = vunpack.c.l.b16 %v530
    %v570 = vunpack.c.h.b16 %v530
    %v571 = vunpack.c.l.b16 %v531
    %v572 = vunpack.c.h.b16 %v531
    %v573 = vunpack.c.l.b16 %v532
    %v574 = vunpack.c.h.b16 %v532
    %v575 = vunpack.c.l.b16 %v533
    %v576 = vunpack.c.h.b16 %v533
    %v577 = vunpack.c.l.b16 %v534
    %v578 = vunpack.c.h.b16 %v534
    %v579 = vunpack.c.l.b16 %v535
    %v580 = vunpack.c.h.b16 %v535
    %v581 = vunpack.c.l.b16 %v536
    %v582 = vunpack.c.h.b16 %v536
    %v583 = vunpack.c.l.b16 %v537
    %v584 = vunpack.c.h.b16 %v537
    %v585 = vunpack.c.l.b16 %v538
    %v586 = vunpack.c.h.b16 %v538
    %v587 = vpack.c.b16 %v557, %v555
    %v588 = vpack.c.b16 %v558, %v556
    %v589 = vpack.c.b16 %v561, %v559
    %v590 = vpack.c.b16 %v562, %v560
    %v591 = vpack.c.b16 %v565, %v563
    %v592 = vpack.c.b16 %v566, %v564
    %v593 = vpack.c.b16 %v569, %v567
    %v594 = vpack.c.b16 %v570, %v568
    %v595 = vpack.c.b16 %v573, %v571
    %v596 = vpack.c.b16 %v574, %v572
    %v597 = vpack.c.b16 %v577, %v575
    %v598 = vpack.c.b16 %v578, %v576
    %v599 = vpack.c.b16 %v581, %v579
    %v600 = vpack.c.b16 %v582, %v580
    %v601 = vpack.c.b16 %v585, %v583
    %v602 = vpack.c.b16 %v586, %v584
    %619 = vmatpush.bf16.msra.mxu0 %v601
    %620 = vmatpush.bf16.msra.mxu0 %v599
    %621 = vmatpush.bf16.msra.mxu0 %v597
    %622 = vmatpush.bf16.msra.mxu0 %v595
    %623 = vmatpush.bf16.msra.mxu0 %v593
    %624 = vmatpush.bf16.msra.mxu0 %v591
    %625 = vmatpush.bf16.msra.mxu0 %v589
    %626 = vmatpush.bf16.msra.mxu0 %v587
    %627 = vmatmul.bf16.gmra.mxu0 %v522
    %v628 = vpop.f32.mrf.mxu0
    %v629 = vadd.f32 0.0, %v628
    %v630 = vpop.f32.mrf.mxu0
    %631 = vdwg.mxu0
    %632 = vmatpush.bf16.msra.mxu0 %v602
    %633 = vmatpush.bf16.msra.mxu0 %v600
    %634 = vmatpush.bf16.msra.mxu0 %v598
    %635 = vmatpush.bf16.msra.mxu0 %v596
    %636 = vmatpush.bf16.msra.mxu0 %v594
    %637 = vmatpush.bf16.msra.mxu0 %v592
    %638 = vmatpush.bf16.msra.mxu0 %v590
    %639 = vmatpush.bf16.msra.mxu0 %v588
    %640 = vmatmul.bf16.gmra.mxu0 %v522
    %v641 = vpop.f32.mrf.mxu0
    %v642 = vadd.f32 0.0, %v641
    %v643 = vpop.f32.mrf.mxu0
    %644 = vdwg.mxu0
    %v645 = vperm.slane %v47, 0
    %v646 = vadd.f32 %v629, %v645
    %v647 = vperm.slane %v47, 1
    %v648 = vadd.f32 %v642, %v647
    %v649 = vmul.f32 %v648, 0.5
    %v650 = vmul.f32 %v649, 1.442695
    %v651 = vpow.pop %v650
    %v652 = vmul.f32 %v43, %v651
    %v653 = vadd.f32 %v652, %v646
    %v654 = vpack.c.bf16 %v653, %v653
    %v655 = vld [vmem:[#allocation5 + $0x18] sm:$0xf]
    %v656 = vld [vmem:[#allocation5 + $0x48] sm:$0xf]
    %v657 = vld [vmem:[#allocation5 + $0x78] sm:$0xf]
    %v658 = vld [vmem:[#allocation5 + $0xa8] sm:$0xf]
    %v659 = vld [vmem:[#allocation5 + $0xd8] sm:$0xf]
    %v660 = vld [vmem:[#allocation5 + $0x108] sm:$0xf]
    %v661 = vld [vmem:[#allocation5 + $0x138] sm:$0xf]
    %v662 = vld [vmem:[#allocation5 + $0x168] sm:$0xf]
    %v663 = vld [vmem:[#allocation5 + $0x198] sm:$0xf]
    %v664 = vld [vmem:[#allocation5 + $0x1c8] sm:$0xf]
    %v665 = vld [vmem:[#allocation5 + $0x1f8] sm:$0xf]
    %v666 = vld [vmem:[#allocation5 + $0x228] sm:$0xf]
    %v667 = vld [vmem:[#allocation5 + $0x258] sm:$0xf]
    %v668 = vld [vmem:[#allocation5 + $0x288] sm:$0xf]
    %v669 = vld [vmem:[#allocation5 + $0x2b8] sm:$0xf]
    %v670 = vld [vmem:[#allocation5 + $0x2e8] sm:$0xf]
    %v687 = vunpack.c.l.b16 %v655
    %v688 = vunpack.c.l.b16 %v656
    %v689 = vunpack.c.l.b16 %v657
    %v690 = vunpack.c.l.b16 %v658
    %v691 = vunpack.c.l.b16 %v659
    %v692 = vunpack.c.l.b16 %v660
    %v693 = vunpack.c.l.b16 %v661
    %v694 = vunpack.c.l.b16 %v662
    %v695 = vunpack.c.l.b16 %v663
    %v696 = vunpack.c.l.b16 %v664
    %v697 = vunpack.c.l.b16 %v665
    %v698 = vunpack.c.l.b16 %v666
    %v699 = vunpack.c.l.b16 %v667
    %v700 = vunpack.c.l.b16 %v668
    %v701 = vunpack.c.l.b16 %v669
    %v702 = vunpack.c.l.b16 %v670
    %v703 = vpack.c.b16 %v688, %v687
    %v704 = vpack.c.b16 %v690, %v689
    %v705 = vpack.c.b16 %v692, %v691
    %v706 = vpack.c.b16 %v694, %v693
    %v707 = vpack.c.b16 %v696, %v695
    %v708 = vpack.c.b16 %v698, %v697
    %v709 = vpack.c.b16 %v700, %v699
    %v710 = vpack.c.b16 %v702, %v701
    %719 = vmatpush.bf16.msra.mxu0 %v710
    %720 = vmatpush.bf16.msra.mxu0 %v709
    %721 = vmatpush.bf16.msra.mxu0 %v708
    %722 = vmatpush.bf16.msra.mxu0 %v707
    %723 = vmatpush.bf16.msra.mxu0 %v706
    %724 = vmatpush.bf16.msra.mxu0 %v705
    %725 = vmatpush.bf16.msra.mxu0 %v704
    %726 = vmatpush.bf16.msra.mxu0 %v703
    %727 = vmatmul.bf16.gmra.mxu0 %v654
    %v728 = vpop.f32.mrf.mxu0
    %v729 = vadd.f32 0.0, %v728
    %v730 = vpop.f32.mrf.mxu0
    %731 = vdwg.mxu0
    %v732 = vrot.slane %v729, 4
    %v733 = vadd.f32 %v729, %v732
    %v734 = vrot.slane %v733, 2
    %v735 = vadd.f32 %v733, %v734
    %v736 = vrot.slane %v735, 1
    %v737 = vadd.f32 %v735, %v736
    %v738 = vmul.f32 %v737, 0.125
    %v739 = vmul.f32 %v729, %v729
    %v740 = vrot.slane %v739, 4
    %v741 = vadd.f32 %v739, %v740
    %v742 = vrot.slane %v741, 2
    %v743 = vadd.f32 %v741, %v742
    %v744 = vrot.slane %v743, 1
    %v745 = vadd.f32 %v743, %v744
    %v746 = vmul.f32 %v745, 0.125
    %v747 = vmul.f32 %v738, %v738
    %v748 = vsub.f32 %v746, %v747
    %v749 = vmax.f32 %v748, 0.0
    %v750 = vadd.f32 %v749, 1e-05
    %v751 = vrsqrt.pop %v750
    %v752 = vmul.f32 %v751, %v750
    %v753 = vmul.f32 %v752, %v751
    %v754 = vmul.f32 0.5, %v753
    %v755 = vsub.f32 1.5, %v754
    %v756 = vmul.f32 %v751, %v755
    %vm757 = vweird.f32 %v750
    %vm758 = vweird.f32 %v751
    %vm759 = vmor %vm757, %vm758
    %v760 = vsel %vm759, %v751, %v756
    %v761 = vmul.f32 %v47, %v760
    %v762 = vmul.f32 %v738, %v761
    %v764 = vrot.slane %v762, 7
    %v766 = vsub.f32 %v48, %v764
    %v767 = vperm.slane %v761, 6
    %v768 = vmul.f32 %v729, %v767
    %v769 = vperm.slane %v766, 7
    %v770 = vadd.f32 %v768, %v769
    %v771 = vmax.f32 %v770, 0.0
    %v772 = vpack.c.bf16 %v771, %v771
    %v773 = vld [vmem:[#allocation5 + $0x1c] sm:$0xf]
    %v774 = vld [vmem:[#allocation5 + $0x4c] sm:$0xf]
    %v775 = vld [vmem:[#allocation5 + $0x7c] sm:$0xf]
    %v776 = vld [vmem:[#allocation5 + $0xac] sm:$0xf]
    %v777 = vld [vmem:[#allocation5 + $0xdc] sm:$0xf]
    %v778 = vld [vmem:[#allocation5 + $0x10c] sm:$0xf]
    %v779 = vld [vmem:[#allocation5 + $0x13c] sm:$0xf]
    %v780 = vld [vmem:[#allocation5 + $0x16c] sm:$0xf]
    %v781 = vld [vmem:[#allocation5 + $0x19c] sm:$0xf]
    %v782 = vld [vmem:[#allocation5 + $0x1cc] sm:$0xf]
    %v783 = vld [vmem:[#allocation5 + $0x1fc] sm:$0xf]
    %v784 = vld [vmem:[#allocation5 + $0x22c] sm:$0xf]
    %v785 = vld [vmem:[#allocation5 + $0x25c] sm:$0xf]
    %v786 = vld [vmem:[#allocation5 + $0x28c] sm:$0xf]
    %v787 = vld [vmem:[#allocation5 + $0x2bc] sm:$0xf]
    %v788 = vld [vmem:[#allocation5 + $0x2ec] sm:$0xf]
    %v805 = vunpack.c.l.b16 %v773
    %v806 = vunpack.c.l.b16 %v774
    %v807 = vunpack.c.l.b16 %v775
    %v808 = vunpack.c.l.b16 %v776
    %v809 = vunpack.c.l.b16 %v777
    %v810 = vunpack.c.l.b16 %v778
    %v811 = vunpack.c.l.b16 %v779
    %v812 = vunpack.c.l.b16 %v780
    %v813 = vunpack.c.l.b16 %v781
    %v814 = vunpack.c.l.b16 %v782
    %v815 = vunpack.c.l.b16 %v783
    %v816 = vunpack.c.l.b16 %v784
    %v817 = vunpack.c.l.b16 %v785
    %v818 = vunpack.c.l.b16 %v786
    %v819 = vunpack.c.l.b16 %v787
    %v820 = vunpack.c.l.b16 %v788
    %v821 = vpack.c.b16 %v806, %v805
    %v822 = vpack.c.b16 %v808, %v807
    %v823 = vpack.c.b16 %v810, %v809
    %v824 = vpack.c.b16 %v812, %v811
    %v825 = vpack.c.b16 %v814, %v813
    %v826 = vpack.c.b16 %v816, %v815
    %v827 = vpack.c.b16 %v818, %v817
    %v828 = vpack.c.b16 %v820, %v819
    %837 = vmatpush.bf16.msra.mxu0 %v828
    %838 = vmatpush.bf16.msra.mxu0 %v827
    %839 = vmatpush.bf16.msra.mxu0 %v826
    %840 = vmatpush.bf16.msra.mxu0 %v825
    %841 = vmatpush.bf16.msra.mxu0 %v824
    %842 = vmatpush.bf16.msra.mxu0 %v823
    %843 = vmatpush.bf16.msra.mxu0 %v822
    %844 = vmatpush.bf16.msra.mxu0 %v821
    %845 = vmatmul.bf16.gmra.mxu0 %v772
    %v846 = vpop.f32.mrf.mxu0
    %v847 = vadd.f32 0.0, %v846
    %v848 = vpop.f32.mrf.mxu0
    %849 = vdwg.mxu0
    %v850 = vrot.slane %v847, 4
    %v851 = vadd.f32 %v847, %v850
    %v852 = vrot.slane %v851, 2
    %v853 = vadd.f32 %v851, %v852
    %v854 = vrot.slane %v853, 1
    %v855 = vadd.f32 %v853, %v854
    %v856 = vmul.f32 %v855, 0.125
    %v857 = vmul.f32 %v847, %v847
    %v858 = vrot.slane %v857, 4
    %v859 = vadd.f32 %v857, %v858
    %v860 = vrot.slane %v859, 2
    %v861 = vadd.f32 %v859, %v860
    %v862 = vrot.slane %v861, 1
    %v863 = vadd.f32 %v861, %v862
    %v864 = vmul.f32 %v863, 0.125
    %v865 = vmul.f32 %v856, %v856
    %v866 = vsub.f32 %v864, %v865
    %v867 = vmax.f32 %v866, 0.0
    %v868 = vadd.f32 %v867, 1e-05
    %v869 = vrsqrt.pop %v868
    %v870 = vmul.f32 %v869, %v868
    %v871 = vmul.f32 %v870, %v869
    %v872 = vmul.f32 0.5, %v871
    %v873 = vsub.f32 1.5, %v872
    %v874 = vmul.f32 %v869, %v873
    %vm875 = vweird.f32 %v868
    %vm876 = vweird.f32 %v869
    %vm877 = vmor %vm875, %vm876
    %v878 = vsel %vm877, %v869, %v874
    %v879 = vmul.f32 %v47, %v878
    %v880 = vmul.f32 %v856, %v879
    %v882 = vrot.slane %v880, 7
    %v884 = vsub.f32 %v49, %v882
    %v885 = vperm.slane %v879, 7
    %v886 = vmul.f32 %v847, %v885
    %v887 = vperm.slane %v884, 0
    %v888 = vadd.f32 %v886, %v887
    %v889 = vmax.f32 %v888, 0.0
    %v890 = vpack.c.bf16 %v889, %v889
    %v891 = vld [vmem:[#allocation5 + $0x20] sm:$0xf]
    %v892 = vld [vmem:[#allocation5 + $0x50] sm:$0xf]
    %v893 = vld [vmem:[#allocation5 + $0x80] sm:$0xf]
    %v894 = vld [vmem:[#allocation5 + $0xb0] sm:$0xf]
    %v895 = vld [vmem:[#allocation5 + $0xe0] sm:$0xf]
    %v896 = vld [vmem:[#allocation5 + $0x110] sm:$0xf]
    %v897 = vld [vmem:[#allocation5 + $0x140] sm:$0xf]
    %v898 = vld [vmem:[#allocation5 + $0x170] sm:$0xf]
    %v899 = vld [vmem:[#allocation5 + $0x1a0] sm:$0xf]
    %v900 = vld [vmem:[#allocation5 + $0x1d0] sm:$0xf]
    %v901 = vld [vmem:[#allocation5 + $0x200] sm:$0xf]
    %v902 = vld [vmem:[#allocation5 + $0x230] sm:$0xf]
    %v903 = vld [vmem:[#allocation5 + $0x260] sm:$0xf]
    %v904 = vld [vmem:[#allocation5 + $0x290] sm:$0xf]
    %v905 = vld [vmem:[#allocation5 + $0x2c0] sm:$0xf]
    %v906 = vld [vmem:[#allocation5 + $0x2f0] sm:$0xf]
    %v923 = vunpack.c.l.b16 %v891
    %v924 = vunpack.c.l.b16 %v892
    %v925 = vunpack.c.l.b16 %v893
    %v926 = vunpack.c.l.b16 %v894
    %v927 = vunpack.c.l.b16 %v895
    %v928 = vunpack.c.l.b16 %v896
    %v929 = vunpack.c.l.b16 %v897
    %v930 = vunpack.c.l.b16 %v898
    %v931 = vunpack.c.l.b16 %v899
    %v932 = vunpack.c.l.b16 %v900
    %v933 = vunpack.c.l.b16 %v901
    %v934 = vunpack.c.l.b16 %v902
    %v935 = vunpack.c.l.b16 %v903
    %v936 = vunpack.c.l.b16 %v904
    %v937 = vunpack.c.l.b16 %v905
    %v938 = vunpack.c.l.b16 %v906
    %v939 = vpack.c.b16 %v924, %v923
    %v940 = vpack.c.b16 %v926, %v925
    %v941 = vpack.c.b16 %v928, %v927
    %v942 = vpack.c.b16 %v930, %v929
    %v943 = vpack.c.b16 %v932, %v931
    %v944 = vpack.c.b16 %v934, %v933
    %v945 = vpack.c.b16 %v936, %v935
    %v946 = vpack.c.b16 %v938, %v937
    %955 = vmatpush.bf16.msra.mxu0 %v946
    %956 = vmatpush.bf16.msra.mxu0 %v945
    %957 = vmatpush.bf16.msra.mxu0 %v944
    %958 = vmatpush.bf16.msra.mxu0 %v943
    %959 = vmatpush.bf16.msra.mxu0 %v942
    %960 = vmatpush.bf16.msra.mxu0 %v941
    %961 = vmatpush.bf16.msra.mxu0 %v940
    %962 = vmatpush.bf16.msra.mxu0 %v939
    %963 = vmatmul.bf16.gmra.mxu0 %v890
    %v964 = vpop.f32.mrf.mxu0
    %v965 = vadd.f32 0.0, %v964
    %v966 = vpop.f32.mrf.mxu0
    %967 = vdwg.mxu0
    %v968 = vrot.slane %v965, 4
    %v969 = vadd.f32 %v965, %v968
    %v970 = vrot.slane %v969, 2
    %v971 = vadd.f32 %v969, %v970
    %v972 = vrot.slane %v971, 1
    %v973 = vadd.f32 %v971, %v972
    %v974 = vmul.f32 %v973, 0.125
    %v975 = vmul.f32 %v965, %v965
    %v976 = vrot.slane %v975, 4
    %v977 = vadd.f32 %v975, %v976
    %v978 = vrot.slane %v977, 2
    %v979 = vadd.f32 %v977, %v978
    %v980 = vrot.slane %v979, 1
    %v981 = vadd.f32 %v979, %v980
    %v982 = vmul.f32 %v981, 0.125
    %v983 = vmul.f32 %v974, %v974
    %v984 = vsub.f32 %v982, %v983
    %v985 = vmax.f32 %v984, 0.0
    %v986 = vadd.f32 %v985, 1e-05
    %v987 = vrsqrt.pop %v986
    %v988 = vmul.f32 %v987, %v986
    %v989 = vmul.f32 %v988, %v987
    %v990 = vmul.f32 0.5, %v989
    %v991 = vsub.f32 1.5, %v990
    %v992 = vmul.f32 %v987, %v991
    %vm993 = vweird.f32 %v986
    %vm994 = vweird.f32 %v987
    %vm995 = vmor %vm993, %vm994
    %v996 = vsel %vm995, %v987, %v992
    %v997 = vmul.f32 %v48, %v996
    %v998 = vmul.f32 %v974, %v997
    %v1000 = vrot.slane %v998, 7
    %v1002 = vsub.f32 %v49, %v1000
    %v1003 = vperm.slane %v997, 0
    %v1004 = vmul.f32 %v965, %v1003
    %v1005 = vperm.slane %v1002, 1
    %v1006 = vadd.f32 %v1004, %v1005
    %v1007 = vmax.f32 %v1006, 0.0
    %v1008 = vpack.c.bf16 %v1007, %v1007
    %v1009 = vld [vmem:[#allocation5 + $0x24] sm:$0xf]
    %v1010 = vld [vmem:[#allocation5 + $0x54] sm:$0xf]
    %v1011 = vld [vmem:[#allocation5 + $0x84] sm:$0xf]
    %v1012 = vld [vmem:[#allocation5 + $0xb4] sm:$0xf]
    %v1013 = vld [vmem:[#allocation5 + $0xe4] sm:$0xf]
    %v1014 = vld [vmem:[#allocation5 + $0x114] sm:$0xf]
    %v1015 = vld [vmem:[#allocation5 + $0x144] sm:$0xf]
    %v1016 = vld [vmem:[#allocation5 + $0x174] sm:$0xf]
    %v1017 = vld [vmem:[#allocation5 + $0x1a4] sm:$0xf]
    %v1018 = vld [vmem:[#allocation5 + $0x1d4] sm:$0xf]
    %v1019 = vld [vmem:[#allocation5 + $0x204] sm:$0xf]
    %v1020 = vld [vmem:[#allocation5 + $0x234] sm:$0xf]
    %v1021 = vld [vmem:[#allocation5 + $0x264] sm:$0xf]
    %v1022 = vld [vmem:[#allocation5 + $0x294] sm:$0xf]
    %v1023 = vld [vmem:[#allocation5 + $0x2c4] sm:$0xf]
    %v1024 = vld [vmem:[#allocation5 + $0x2f4] sm:$0xf]
    %v1041 = vunpack.c.l.b16 %v1009
    %v1042 = vunpack.c.l.b16 %v1010
    %v1043 = vunpack.c.l.b16 %v1011
    %v1044 = vunpack.c.l.b16 %v1012
    %v1045 = vunpack.c.l.b16 %v1013
    %v1046 = vunpack.c.l.b16 %v1014
    %v1047 = vunpack.c.l.b16 %v1015
    %v1048 = vunpack.c.l.b16 %v1016
    %v1049 = vunpack.c.l.b16 %v1017
    %v1050 = vunpack.c.l.b16 %v1018
    %v1051 = vunpack.c.l.b16 %v1019
    %v1052 = vunpack.c.l.b16 %v1020
    %v1053 = vunpack.c.l.b16 %v1021
    %v1054 = vunpack.c.l.b16 %v1022
    %v1055 = vunpack.c.l.b16 %v1023
    %v1056 = vunpack.c.l.b16 %v1024
    %v1057 = vpack.c.b16 %v1042, %v1041
    %v1058 = vpack.c.b16 %v1044, %v1043
    %v1059 = vpack.c.b16 %v1046, %v1045
    %v1060 = vpack.c.b16 %v1048, %v1047
    %v1061 = vpack.c.b16 %v1050, %v1049
    %v1062 = vpack.c.b16 %v1052, %v1051
    %v1063 = vpack.c.b16 %v1054, %v1053
    %v1064 = vpack.c.b16 %v1056, %v1055
    %1073 = vmatpush.bf16.msra.mxu0 %v1064
    %1074 = vmatpush.bf16.msra.mxu0 %v1063
    %1075 = vmatpush.bf16.msra.mxu0 %v1062
    %1076 = vmatpush.bf16.msra.mxu0 %v1061
    %1077 = vmatpush.bf16.msra.mxu0 %v1060
    %1078 = vmatpush.bf16.msra.mxu0 %v1059
    %1079 = vmatpush.bf16.msra.mxu0 %v1058
    %1080 = vmatpush.bf16.msra.mxu0 %v1057
    %1081 = vmatmul.bf16.gmra.mxu0 %v1008
    %v1082 = vpop.f32.mrf.mxu0
    %v1083 = vadd.f32 0.0, %v1082
    %v1084 = vpop.f32.mrf.mxu0
    %1085 = vdwg.mxu0
    %v1086 = vrot.slane %v1083, 4
    %v1087 = vadd.f32 %v1083, %v1086
    %v1088 = vrot.slane %v1087, 2
    %v1089 = vadd.f32 %v1087, %v1088
    %v1090 = vrot.slane %v1089, 1
    %v1091 = vadd.f32 %v1089, %v1090
    %v1092 = vmul.f32 %v1091, 0.125
    %v1093 = vmul.f32 %v1083, %v1083
    %v1094 = vrot.slane %v1093, 4
    %v1095 = vadd.f32 %v1093, %v1094
    %v1096 = vrot.slane %v1095, 2
    %v1097 = vadd.f32 %v1095, %v1096
    %v1098 = vrot.slane %v1097, 1
    %v1099 = vadd.f32 %v1097, %v1098
    %v1100 = vmul.f32 %v1099, 0.125
    %v1101 = vmul.f32 %v1092, %v1092
    %v1102 = vsub.f32 %v1100, %v1101
    %v1103 = vmax.f32 %v1102, 0.0
    %v1104 = vadd.f32 %v1103, 1e-05
    %v1105 = vrsqrt.pop %v1104
    %v1106 = vmul.f32 %v1105, %v1104
    %v1107 = vmul.f32 %v1106, %v1105
    %v1108 = vmul.f32 0.5, %v1107
    %v1109 = vsub.f32 1.5, %v1108
    %v1110 = vmul.f32 %v1105, %v1109
    %vm1111 = vweird.f32 %v1104
    %vm1112 = vweird.f32 %v1105
    %vm1113 = vmor %vm1111, %vm1112
    %v1114 = vsel %vm1113, %v1105, %v1110
    %v1115 = vmul.f32 %v48, %v1114
    %v1116 = vmul.f32 %v1092, %v1115
    %v1118 = vrot.slane %v1116, 7
    %v1120 = vsub.f32 %v49, %v1118
    %v1121 = vperm.slane %v1115, 1
    %v1122 = vmul.f32 %v1083, %v1121
    %v1123 = vperm.slane %v1120, 2
    %v1124 = vadd.f32 %v1122, %v1123
    %v1125 = vmax.f32 %v1124, 0.0
    %v1126 = vpack.c.bf16 %v1125, %v1125
    %v1127 = vld [vmem:[#allocation5 + $0x28] sm:$0xf]
    %v1128 = vld [vmem:[#allocation5 + $0x58] sm:$0xf]
    %v1129 = vld [vmem:[#allocation5 + $0x88] sm:$0xf]
    %v1130 = vld [vmem:[#allocation5 + $0xb8] sm:$0xf]
    %v1131 = vld [vmem:[#allocation5 + $0xe8] sm:$0xf]
    %v1132 = vld [vmem:[#allocation5 + $0x118] sm:$0xf]
    %v1133 = vld [vmem:[#allocation5 + $0x148] sm:$0xf]
    %v1134 = vld [vmem:[#allocation5 + $0x178] sm:$0xf]
    %v1135 = vld [vmem:[#allocation5 + $0x1a8] sm:$0xf]
    %v1136 = vld [vmem:[#allocation5 + $0x1d8] sm:$0xf]
    %v1137 = vld [vmem:[#allocation5 + $0x208] sm:$0xf]
    %v1138 = vld [vmem:[#allocation5 + $0x238] sm:$0xf]
    %v1139 = vld [vmem:[#allocation5 + $0x268] sm:$0xf]
    %v1140 = vld [vmem:[#allocation5 + $0x298] sm:$0xf]
    %v1141 = vld [vmem:[#allocation5 + $0x2c8] sm:$0xf]
    %v1142 = vld [vmem:[#allocation5 + $0x2f8] sm:$0xf]
    %v1159 = vunpack.c.l.b16 %v1127
    %v1160 = vunpack.c.l.b16 %v1128
    %v1161 = vunpack.c.l.b16 %v1129
    %v1162 = vunpack.c.l.b16 %v1130
    %v1163 = vunpack.c.l.b16 %v1131
    %v1164 = vunpack.c.l.b16 %v1132
    %v1165 = vunpack.c.l.b16 %v1133
    %v1166 = vunpack.c.l.b16 %v1134
    %v1167 = vunpack.c.l.b16 %v1135
    %v1168 = vunpack.c.l.b16 %v1136
    %v1169 = vunpack.c.l.b16 %v1137
    %v1170 = vunpack.c.l.b16 %v1138
    %v1171 = vunpack.c.l.b16 %v1139
    %v1172 = vunpack.c.l.b16 %v1140
    %v1173 = vunpack.c.l.b16 %v1141
    %v1174 = vunpack.c.l.b16 %v1142
    %v1175 = vpack.c.b16 %v1160, %v1159
    %v1176 = vpack.c.b16 %v1162, %v1161
    %v1177 = vpack.c.b16 %v1164, %v1163
    %v1178 = vpack.c.b16 %v1166, %v1165
    %v1179 = vpack.c.b16 %v1168, %v1167
    %v1180 = vpack.c.b16 %v1170, %v1169
    %v1181 = vpack.c.b16 %v1172, %v1171
    %v1182 = vpack.c.b16 %v1174, %v1173
    %1191 = vmatpush.bf16.msra.mxu0 %v1182
    %1192 = vmatpush.bf16.msra.mxu0 %v1181
    %1193 = vmatpush.bf16.msra.mxu0 %v1180
    %1194 = vmatpush.bf16.msra.mxu0 %v1179
    %1195 = vmatpush.bf16.msra.mxu0 %v1178
    %1196 = vmatpush.bf16.msra.mxu0 %v1177
    %1197 = vmatpush.bf16.msra.mxu0 %v1176
    %1198 = vmatpush.bf16.msra.mxu0 %v1175
    %1199 = vmatmul.bf16.gmra.mxu0 %v1126
    %v1200 = vpop.f32.mrf.mxu0
    %v1201 = vadd.f32 0.0, %v1200
    %v1202 = vpop.f32.mrf.mxu0
    %1203 = vdwg.mxu0
    %v1204 = vrot.slane %v1201, 4
    %v1205 = vadd.f32 %v1201, %v1204
    %v1206 = vrot.slane %v1205, 2
    %v1207 = vadd.f32 %v1205, %v1206
    %v1208 = vrot.slane %v1207, 1
    %v1209 = vadd.f32 %v1207, %v1208
    %v1210 = vmul.f32 %v1209, 0.125
    %v1211 = vmul.f32 %v1201, %v1201
    %v1212 = vrot.slane %v1211, 4
    %v1213 = vadd.f32 %v1211, %v1212
    %v1214 = vrot.slane %v1213, 2
    %v1215 = vadd.f32 %v1213, %v1214
    %v1216 = vrot.slane %v1215, 1
    %v1217 = vadd.f32 %v1215, %v1216
    %v1218 = vmul.f32 %v1217, 0.125
    %v1219 = vmul.f32 %v1210, %v1210
    %v1220 = vsub.f32 %v1218, %v1219
    %v1221 = vmax.f32 %v1220, 0.0
    %v1222 = vadd.f32 %v1221, 1e-05
    %v1223 = vrsqrt.pop %v1222
    %v1224 = vmul.f32 %v1223, %v1222
    %v1225 = vmul.f32 %v1224, %v1223
    %v1226 = vmul.f32 0.5, %v1225
    %v1227 = vsub.f32 1.5, %v1226
    %v1228 = vmul.f32 %v1223, %v1227
    %vm1229 = vweird.f32 %v1222
    %vm1230 = vweird.f32 %v1223
    %vm1231 = vmor %vm1229, %vm1230
    %v1232 = vsel %vm1231, %v1223, %v1228
    %v1233 = vmul.f32 %v48, %v1232
    %v1234 = vmul.f32 %v1210, %v1233
    %v1236 = vrot.slane %v1234, 7
    %v1238 = vsub.f32 %v49, %v1236
    %v1239 = vperm.slane %v1233, 2
    %v1240 = vmul.f32 %v1201, %v1239
    %v1241 = vperm.slane %v1238, 3
    %v1242 = vadd.f32 %v1240, %v1241
    %1243 = vst [vmem:[#allocation7] sm:$0xff] %v1242
    %1244 = vst [vmem:[#allocation7 + $0x8] sm:$0xff] %v646
    %1245 = vst [vmem:[#allocation7 + $0x10] sm:$0xff] %v648
    // Predicated region
    $region18: #{tpu_custom_call.1} parent=1 // pred_check
      _
    $region19: #{tpu_custom_call.1} parent=1 // pred_check_branch
      %1247 = sbr.rel (0) target = $region21
    $region20: #{tpu_custom_call.1} parent=1 // pred_region
      %1249 = vsyncadd [#allocation4], 0
      %s1251 = sshll.u32 [#allocation7], 4
      %s1252 = int_to_ptr.vmem [resolvable:$true] %s1251
      %s1253 = sshll.u32 %s2, 4
      %s1254 = int_to_ptr.hbm [resolvable:$true] %s1253
      %1256 = dma.vmem_to_hbm [thread:$0]  %s1252, 384, %s1254, [#allocation4]
    $region21: #{tpu_custom_call.1} parent=1 // pred_fallthru
      _
    // Predicated region
    $region22: #{tpu_custom_call.1} parent=1 // pred_check
      _
    $region23: #{tpu_custom_call.1} parent=1 // pred_check_branch
      %1258 = sbr.rel (0) target = $region25
    $region24: #{tpu_custom_call.1} parent=1 // pred_region
      %1260 = dma.done [#allocation4], 384
    $region25: #{tpu_custom_call.1} parent=1 // pred_fallthru
      _
    %1261 = vsyncpa [#allocation3], 1
    %1262 = vsyncpa [#allocation6], 1
    %1263 = vsyncpa [#allocation4], 1

</llo_original>
